<compile_context>
chip_gen: v5e
topology: v5e:2x2
jax: 0.10.0
libtpu: 0.0.40
codegen_flags: <defaults>
</compile_context>

<pallas_src>
import jax
import jax.numpy as jnp
from jax import lax
from jax.experimental import pallas as pl
from jax.experimental.pallas import tpu as pltpu


# ----------------------------- in-kernel math ------------------------------ #

def _erf(x):
    # Abramowitz & Stegun 7.1.26, |error| < 1.5e-7 (well below test tolerance).
    p = 0.3275911
    a1, a2, a3, a4, a5 = (0.254829592, -0.284496736, 1.421413741,
                          -1.453152027, 1.061405429)
    ax = jnp.abs(x)
    t = 1.0 / (1.0 + p * ax)
    poly = ((((a5 * t + a4) * t + a3) * t + a2) * t + a1) * t
    y = 1.0 - poly * jnp.exp(-(ax * ax))
    return jnp.where(x >= 0, y, -y)


def _gelu_exact(x):
    # Matches torch.nn.GELU() (approximate='none').
    return 0.5 * x * (1.0 + _erf(x * 0.7071067811865476))


def _dseconv_kernel(x_ref, w1_ref, b1_ref, w2_ref, b2_ref, o_ref, ypad_ref):
    """One block of Nb frames, everything lane-dense.

    x_ref   : (Nb, H+2, W*C)   H-halo-padded, channel-packed rows
    w1_ref  : (3, W*C, W*C)    banded (depthwise∘pointwise) weights, dy-major
    b1_ref  : (1, W*C)         combined bias tiled across W
    w2_ref  : (3, W*C, W*C)    banded convout weights
    b2_ref  : (1, W*C)         convout bias tiled across W
    o_ref   : (Nb, H, W*C)     lane-dense output
    ypad_ref: (Nb, H+2, W*C)   VMEM scratch for the second conv's halo rows
    """
    nb, hp2, wc = x_ref.shape
    h = hp2 - 2

    # Residual input: pure sublane-offset slice (no lane shift).
    x_in = x_ref[:, 1:1 + h, :].reshape(nb * h, wc)

    # ---- conv1: reparameterized depthwise + pointwise folded into one 3x3 ----
    acc = jnp.zeros((nb * h, wc), jnp.float32)
    for dy in range(3):
        lhs = x_ref[:, dy:dy + h, :].reshape(nb * h, wc)
        acc = acc + jnp.dot(lhs, w1_ref[dy], preferred_element_type=jnp.float32)
    acc = acc + b1_ref[...]                       # single hoisted broadcast
    y = _gelu_exact(acc) + x_in                   # GELU + residual

    # ---- stage H-halo-padded intermediate for the second conv ----
    zero_row = jnp.zeros((nb, 1, wc), jnp.float32)
    ypad_ref[:, 0:1, :] = zero_row
    ypad_ref[:, h + 1:h + 2, :] = zero_row
    ypad_ref[:, 1:1 + h, :] = y.reshape(nb, h, wc)

    # ---- conv2: convout 3x3 + bias + residual ----
    acc2 = jnp.zeros((nb * h, wc), jnp.float32)
    for dy in range(3):
        lhs = ypad_ref[:, dy:dy + h, :].reshape(nb * h, wc)
        acc2 = acc2 + jnp.dot(lhs, w2_ref[dy], preferred_element_type=jnp.float32)
    acc2 = acc2 + b2_ref[...] + x_in
    o_ref[...] = acc2.reshape(nb, h, wc).astype(o_ref.dtype)


# --------------------------- host-side weight prep -------------------------- #

def _reparam_dse(w_cd, b_cd, w_hd, b_hd, w_vd, b_vd, w4, b4):
    """DSEConv.get_weight() reparameterization -> depthwise (C,1,3,3) + bias."""
    c = w_cd.shape[0]
    wcd = w_cd.reshape(c, 1, 9)
    wcd = wcd.at[:, :, 4].set(wcd[:, :, 4] - wcd.sum(axis=2))
    whd = jnp.zeros((c, 1, 9), w_hd.dtype)
    whd = whd.at[:, :, jnp.array([0, 3, 6])].set(w_hd)
    whd = whd.at[:, :, jnp.array([2, 5, 8])].set(-w_hd)
    wvd = jnp.zeros((c, 1, 9), w_vd.dtype)
    wvd = wvd.at[:, :, jnp.array([0, 1, 2])].set(w_vd)
    wvd = wvd.at[:, :, jnp.array([6, 7, 8])].set(-w_vd)
    w_dw = (wcd + whd + wvd).reshape(c, 1, 3, 3) + w4
    b_dw = b_cd + b_hd + b_vd + b4
    return w_dw, b_dw


def _band_weights(w_hwio, W):
    """Fold dx taps AND W zero-padding of a 3x3 conv into banded matrices.

    w_hwio: (3, 3, Cin, Cout) -> (3, W*Cin, W*Cout) with
      band[dy, src*Cin + ci, x*Cout + co] = w_hwio[dy, dx, ci, co],
      src = x + dx - 1 (entries with src outside [0, W) are dropped = zero pad).
    """
    _, _, cin, cout = w_hwio.shape
    bands = []
    for dy in range(3):
        band = jnp.zeros((W * cin, W * cout), w_hwio.dtype)
        for dx in range(3):
            shift = jnp.eye(W, W, k=1 - dx, dtype=w_hwio.dtype)   # [src, x]
            blk = jnp.einsum('sx,io->sixo', shift, w_hwio[dy, dx])
            band = band + blk.reshape(W * cin, W * cout)
        bands.append(band)
    return jnp.stack(bands, axis=0)


# --------------------------------- wrapper ---------------------------------- #

def dseconv_frames(x, w_cd, b_cd, w_hd, b_hd, w_vd, b_vd, w4, b4,
                   w_pw, b_pw, w_out, b_out):
    """Per-frame DSEConv of DynNet.  x: (b, f, c, h, w) -> (b, f, c, h, w)."""
    b, f, c, h, w = x.shape
    n = b * f

    # Reparameterize and fold depthwise ∘ pointwise into one dense 3x3 conv.
    w_dw, b_dw = _reparam_dse(w_cd, b_cd, w_hd, b_hd, w_vd, b_vd, w4, b4)
    pw = w_pw[:, :, 0, 0]                                    # (co, ci)
    w1 = pw[:, :, None, None] * w_dw[None, :, 0, :, :]       # (co, ci, 3, 3)
    b1 = b_pw + pw @ b_dw

    w1_band = _band_weights(jnp.transpose(w1, (2, 3, 1, 0)), w)     # (3, wc, wc)
    w2_band = _band_weights(jnp.transpose(w_out, (2, 3, 1, 0)), w)  # (3, wc, wc)
    b1_row = jnp.tile(b1, w).reshape(1, w * c)
    b2_row = jnp.tile(b_out, w).reshape(1, w * c)

    # Channel-packed lane-dense rows; only H halo rows are materialized
    # (the W halo lives inside the banded weights).
    x_pack = jnp.transpose(x.reshape(n, c, h, w), (0, 2, 3, 1)).reshape(n, h, w * c)
    x_pad = jnp.pad(x_pack, ((0, 0), (1, 1), (0, 0)))

    # Two parallel grid steps when possible (both v7x TensorCores busy).
    if n % 2 == 0 and n > 1:
        g, nb = 2, n // 2
    else:
        g, nb = 1, n
    # TODO(synk): for production H/W additionally tile H so blocks stay under
    # v7x's 64 MiB VMEM; at these shapes the whole problem is ~2 MiB.

    out_pack = pl.pallas_call(
        _dseconv_kernel,
        out_shape=jax.ShapeDtypeStruct((n, h, w * c), x.dtype),
        grid_spec=pltpu.PrefetchScalarGridSpec(
            num_scalar_prefetch=0,
            grid=(g,),
            in_specs=[
                pl.BlockSpec((nb, h + 2, w * c), lambda i: (i, 0, 0)),
                pl.BlockSpec((3, w * c, w * c), lambda i: (0, 0, 0)),
                pl.BlockSpec((1, w * c), lambda i: (0, 0)),
                pl.BlockSpec((3, w * c, w * c), lambda i: (0, 0, 0)),
                pl.BlockSpec((1, w * c), lambda i: (0, 0)),
            ],
            out_specs=pl.BlockSpec((nb, h, w * c), lambda i: (i, 0, 0)),
            scratch_shapes=[pltpu.VMEM((nb, h + 2, w * c), jnp.float32)],
        ),
        compiler_params=pltpu.CompilerParams(
            dimension_semantics=("parallel",)),
    )(x_pad, w1_band, b1_row, w2_band, b2_row)

    out = out_pack.reshape(n, h, w, c)
    out = jnp.transpose(out, (0, 3, 1, 2)).reshape(b, f, c, h, w)
    return out


# -------------------------------- reference --------------------------------- #

def _reference(x, w_dw, b_dw, w_pw, b_pw, w_out, b_out):
    b, f, c, h, w = x.shape
    xn = x.reshape(b * f, c, h, w)
    dn = ("NCHW", "OIHW", "NCHW")
    hi = lax.Precision.HIGHEST
    y = lax.conv_general_dilated(xn, w_dw, (1, 1), "SAME",
                                 dimension_numbers=dn, feature_group_count=c,
                                 precision=hi)
    y = y + b_dw[None, :, None, None]
    y = lax.conv_general_dilated(y, w_pw, (1, 1), "SAME",
                                 dimension_numbers=dn, precision=hi)
    y = y + b_pw[None, :, None, None]
    y = jax.nn.gelu(y, approximate=False)
    y = y + xn
    y = lax.conv_general_dilated(y, w_out, (1, 1), "SAME",
                                 dimension_numbers=dn, precision=hi)
    y = y + b_out[None, :, None, None]
    y = y + xn
    return y.reshape(b, f, c, h, w)


# ----------------------------------- main ------------------------------------ #

if __name__ == "__main__":
    key = jax.random.PRNGKey(0)
    ks = jax.random.split(key, 13)

    # Small shapes consistent with the module: b=2 clips, f=3 frames,
    # dim=16 channels, 16x16 spatial (w * dim = 256 -> fully lane-dense).
    b, f, dim, h, w = 2, 3, 16, 16, 16
    x = jax.random.normal(ks[0], (b, f, dim, h, w), dtype=jnp.float32)

    def uni(k, shape, fan_in):
        bound = 1.0 / (fan_in ** 0.5)
        return jax.random.uniform(k, shape, jnp.float32, -bound, bound)

    # Raw parameters mirroring the PyTorch DSEConv submodules.
    w_cd = uni(ks[1], (dim, 1, 3, 3), 9)       # Conv2d_cd  (grouped 3x3)
    b_cd = uni(ks[2], (dim,), 9)
    w_hd = uni(ks[3], (dim, 1, 3), 3)          # Conv2d_hd  (Conv1d, grouped)
    b_hd = uni(ks[4], (dim,), 3)
    w_vd = uni(ks[5], (dim, 1, 3), 3)          # Conv2d_vd  (Conv1d, grouped)
    b_vd = uni(ks[6], (dim,), 3)
    w4 = uni(ks[7], (dim, 1, 3, 3), 9)         # conv1_4    (grouped 3x3)
    b4 = uni(ks[8], (dim,), 9)
    w_pw = uni(ks[9], (dim, dim, 1, 1), dim)   # pointwise 1x1
    b_pw = uni(ks[10], (dim,), dim)
    w_out = uni(ks[11], (dim, dim, 3, 3), dim * 9)   # convout 3x3
    b_out = uni(ks[12], (dim,), dim * 9)

    out = dseconv_frames(x, w_cd, b_cd, w_hd, b_hd, w_vd, b_vd, w4, b4,
                         w_pw, b_pw, w_out, b_out)
    out = jax.block_until_ready(out)

    w_dw, b_dw = _reparam_dse(w_cd, b_cd, w_hd, b_hd, w_vd, b_vd, w4, b4)
    ref = _reference(x, w_dw, b_dw, w_pw, b_pw, w_out, b_out)

    assert out.shape == (b, f, dim, h, w)
    err = float(jnp.max(jnp.abs(out - ref)))
    assert jnp.allclose(out, ref, atol=5e-4, rtol=5e-4), err

    print("KERNEL_OK")
</pallas_src>

<mosaic_0001>
module attributes {stable_mosaic.version = 11 : i64} {
  func.func @_dseconv_kernel(%arg0: i32, %arg1: memref<3x18x256xf32, #tpu.memory_space<vmem>>, %arg2: memref<3x256x256xf32, #tpu.memory_space<vmem>>, %arg3: memref<1x256xf32, #tpu.memory_space<vmem>>, %arg4: memref<3x256x256xf32, #tpu.memory_space<vmem>>, %arg5: memref<1x256xf32, #tpu.memory_space<vmem>>, %arg6: memref<3x16x256xf32, #tpu.memory_space<vmem>>, %arg7: memref<3x18x256xf32, #tpu.memory_space<vmem>>) attributes {dimension_semantics = [#tpu.dimension_semantics<parallel>], iteration_bounds = array<i64: 2>, scalar_prefetch = 0 : i64, scratch_operands = 1 : i64, tpu.core_type = #tpu.core_type<tc>, window_params = [{transform_indices = @transform_0, window_bounds = array<i64: 3, 18, 256>}, {pipeline_mode = #tpu.pipeline_mode<synchronous>, transform_indices = @transform_1, window_bounds = array<i64: 3, 256, 256>}, {pipeline_mode = #tpu.pipeline_mode<synchronous>, transform_indices = @transform_2, window_bounds = array<i64: 1, 256>}, {pipeline_mode = #tpu.pipeline_mode<synchronous>, transform_indices = @transform_3, window_bounds = array<i64: 3, 256, 256>}, {pipeline_mode = #tpu.pipeline_mode<synchronous>, transform_indices = @transform_4, window_bounds = array<i64: 1, 256>}, {transform_indices = @transform_5, window_bounds = array<i64: 3, 16, 256>}]} {
    %c0 = arith.constant 0 : index
    %c1 = arith.constant 1 : index
    %c0_0 = arith.constant 0 : index
    %0 = vector.load %arg1[%c0, %c1, %c0_0] : memref<3x18x256xf32, #tpu.memory_space<vmem>>, vector<3x16x256xf32>
    %1 = vector.shape_cast %0 : vector<3x16x256xf32> to vector<48x256xf32>
    %cst = arith.constant 0.000000e+00 : f32
    %2 = vector.broadcast %cst : f32 to vector<48x256xf32>
    %c0_1 = arith.constant 0 : index
    %c0_2 = arith.constant 0 : index
    %c0_3 = arith.constant 0 : index
    %3 = vector.load %arg1[%c0_1, %c0_2, %c0_3] : memref<3x18x256xf32, #tpu.memory_space<vmem>>, vector<3x16x256xf32>
    %4 = vector.shape_cast %3 : vector<3x16x256xf32> to vector<48x256xf32>
    %c0_4 = arith.constant 0 : index
    %c0_5 = arith.constant 0 : index
    %c0_6 = arith.constant 0 : index
    %5 = vector.load %arg2[%c0_4, %c0_5, %c0_6] : memref<3x256x256xf32, #tpu.memory_space<vmem>>, vector<1x256x256xf32>
    %6 = vector.shape_cast %5 : vector<1x256x256xf32> to vector<256x256xf32>
    %cst_7 = arith.constant dense<0.000000e+00> : vector<48x256xf32>
    %7 = tpu.matmul %4, %6, %cst_7 {dimension_numbers = #tpu.dot_dimension_numbers<[1], [0], [0], [1], [0, 0, 1, 1], [], []>} : vector<48x256xf32>, vector<256x256xf32>, vector<48x256xf32> -> vector<48x256xf32>
    %8 = arith.addf %2, %7 : vector<48x256xf32>
    %c0_8 = arith.constant 0 : index
    %c1_9 = arith.constant 1 : index
    %c0_10 = arith.constant 0 : index
    %9 = vector.load %arg1[%c0_8, %c1_9, %c0_10] : memref<3x18x256xf32, #tpu.memory_space<vmem>>, vector<3x16x256xf32>
    %10 = vector.shape_cast %9 : vector<3x16x256xf32> to vector<48x256xf32>
    %c1_11 = arith.constant 1 : index
    %c0_12 = arith.constant 0 : index
    %c0_13 = arith.constant 0 : index
    %11 = vector.load %arg2[%c1_11, %c0_12, %c0_13] : memref<3x256x256xf32, #tpu.memory_space<vmem>>, vector<1x256x256xf32>
    %12 = vector.shape_cast %11 : vector<1x256x256xf32> to vector<256x256xf32>
    %cst_14 = arith.constant dense<0.000000e+00> : vector<48x256xf32>
    %13 = tpu.matmul %10, %12, %cst_14 {dimension_numbers = #tpu.dot_dimension_numbers<[1], [0], [0], [1], [0, 0, 1, 1], [], []>} : vector<48x256xf32>, vector<256x256xf32>, vector<48x256xf32> -> vector<48x256xf32>
    %14 = arith.addf %8, %13 : vector<48x256xf32>
    %c0_15 = arith.constant 0 : index
    %c2 = arith.constant 2 : index
    %c0_16 = arith.constant 0 : index
    %15 = vector.load %arg1[%c0_15, %c2, %c0_16] : memref<3x18x256xf32, #tpu.memory_space<vmem>>, vector<3x16x256xf32>
    %16 = vector.shape_cast %15 : vector<3x16x256xf32> to vector<48x256xf32>
    %c2_17 = arith.constant 2 : index
    %c0_18 = arith.constant 0 : index
    %c0_19 = arith.constant 0 : index
    %17 = vector.load %arg2[%c2_17, %c0_18, %c0_19] : memref<3x256x256xf32, #tpu.memory_space<vmem>>, vector<1x256x256xf32>
    %18 = vector.shape_cast %17 : vector<1x256x256xf32> to vector<256x256xf32>
    %cst_20 = arith.constant dense<0.000000e+00> : vector<48x256xf32>
    %19 = tpu.matmul %16, %18, %cst_20 {dimension_numbers = #tpu.dot_dimension_numbers<[1], [0], [0], [1], [0, 0, 1, 1], [], []>} : vector<48x256xf32>, vector<256x256xf32>, vector<48x256xf32> -> vector<48x256xf32>
    %20 = arith.addf %14, %19 : vector<48x256xf32>
    %c0_21 = arith.constant 0 : index
    %c0_22 = arith.constant 0 : index
    %21 = vector.load %arg3[%c0_21, %c0_22] : memref<1x256xf32, #tpu.memory_space<vmem>>, vector<1x256xf32>
    %22 = vector.broadcast %21 : vector<1x256xf32> to vector<48x256xf32>
    %23 = arith.addf %20, %22 : vector<48x256xf32>
    %cst_23 = arith.constant 5.000000e-01 : f32
    %24 = vector.broadcast %cst_23 : f32 to vector<48x256xf32>
    %25 = arith.mulf %24, %23 : vector<48x256xf32>
    %cst_24 = arith.constant 0.707106769 : f32
    %26 = vector.broadcast %cst_24 : f32 to vector<48x256xf32>
    %27 = arith.mulf %23, %26 : vector<48x256xf32>
    %28 = math.absf %27 : vector<48x256xf32>
    %cst_25 = arith.constant 0.327591091 : f32
    %29 = vector.broadcast %cst_25 : f32 to vector<48x256xf32>
    %30 = arith.mulf %29, %28 : vector<48x256xf32>
    %cst_26 = arith.constant 1.000000e+00 : f32
    %31 = vector.broadcast %cst_26 : f32 to vector<48x256xf32>
    %32 = arith.addf %31, %30 : vector<48x256xf32>
    %cst_27 = arith.constant 1.000000e+00 : f32
    %33 = vector.broadcast %cst_27 : f32 to vector<48x256xf32>
    %34 = arith.divf %33, %32 : vector<48x256xf32>
    %cst_28 = arith.constant 1.06140542 : f32
    %35 = vector.broadcast %cst_28 : f32 to vector<48x256xf32>
    %36 = arith.mulf %35, %34 : vector<48x256xf32>
    %cst_29 = arith.constant -1.45315206 : f32
    %37 = vector.broadcast %cst_29 : f32 to vector<48x256xf32>
    %38 = arith.addf %36, %37 : vector<48x256xf32>
    %39 = arith.mulf %38, %34 : vector<48x256xf32>
    %cst_30 = arith.constant 1.42141378 : f32
    %40 = vector.broadcast %cst_30 : f32 to vector<48x256xf32>
    %41 = arith.addf %39, %40 : vector<48x256xf32>
    %42 = arith.mulf %41, %34 : vector<48x256xf32>
    %cst_31 = arith.constant -0.284496725 : f32
    %43 = vector.broadcast %cst_31 : f32 to vector<48x256xf32>
    %44 = arith.addf %42, %43 : vector<48x256xf32>
    %45 = arith.mulf %44, %34 : vector<48x256xf32>
    %cst_32 = arith.constant 0.254829586 : f32
    %46 = vector.broadcast %cst_32 : f32 to vector<48x256xf32>
    %47 = arith.addf %45, %46 : vector<48x256xf32>
    %48 = arith.mulf %47, %34 : vector<48x256xf32>
    %49 = arith.mulf %28, %28 : vector<48x256xf32>
    %cst_33 = arith.constant 0.000000e+00 : f32
    %50 = vector.broadcast %cst_33 : f32 to vector<48x256xf32>
    %51 = arith.subf %50, %49 : vector<48x256xf32>
    %52 = math.exp %51 : vector<48x256xf32>
    %53 = arith.mulf %48, %52 : vector<48x256xf32>
    %cst_34 = arith.constant 1.000000e+00 : f32
    %54 = vector.broadcast %cst_34 : f32 to vector<48x256xf32>
    %55 = arith.subf %54, %53 : vector<48x256xf32>
    %cst_35 = arith.constant 0.000000e+00 : f32
    %56 = vector.broadcast %cst_35 : f32 to vector<48x256xf32>
    %57 = arith.cmpf oge, %27, %56 : vector<48x256xf32>
    %cst_36 = arith.constant 0.000000e+00 : f32
    %58 = vector.broadcast %cst_36 : f32 to vector<48x256xf32>
    %59 = arith.subf %58, %55 : vector<48x256xf32>
    %60 = arith.select %57, %55, %59 : vector<48x256xi1>, vector<48x256xf32>
    %cst_37 = arith.constant 1.000000e+00 : f32
    %61 = vector.broadcast %cst_37 : f32 to vector<48x256xf32>
    %62 = arith.addf %61, %60 : vector<48x256xf32>
    %63 = arith.mulf %25, %62 : vector<48x256xf32>
    %64 = arith.addf %63, %1 : vector<48x256xf32>
    %cst_38 = arith.constant 0.000000e+00 : f32
    %65 = vector.broadcast %cst_38 : f32 to vector<3x1x256xf32>
    %c0_39 = arith.constant 0 : index
    %c0_40 = arith.constant 0 : index
    %c0_41 = arith.constant 0 : index
    %66 = vector.load %arg7[%c0_39, %c0_40, %c0_41] : memref<3x18x256xf32, #tpu.memory_space<vmem>>, vector<3x1x256xf32>
    tpu.vector_store %arg7[%c0_39, %c0_40, %c0_41], %65 {strides = array<i32>} : memref<3x18x256xf32, #tpu.memory_space<vmem>>, vector<3x1x256xf32>,
    %c0_42 = arith.constant 0 : index
    %c17 = arith.constant 17 : index
    %c0_43 = arith.constant 0 : index
    %67 = vector.load %arg7[%c0_42, %c17, %c0_43] : memref<3x18x256xf32, #tpu.memory_space<vmem>>, vector<3x1x256xf32>
    tpu.vector_store %arg7[%c0_42, %c17, %c0_43], %65 {strides = array<i32>} : memref<3x18x256xf32, #tpu.memory_space<vmem>>, vector<3x1x256xf32>,
    %68 = vector.shape_cast %64 : vector<48x256xf32> to vector<3x16x256xf32>
    %c0_44 = arith.constant 0 : index
    %c1_45 = arith.constant 1 : index
    %c0_46 = arith.constant 0 : index
    %69 = vector.load %arg7[%c0_44, %c1_45, %c0_46] : memref<3x18x256xf32, #tpu.memory_space<vmem>>, vector<3x16x256xf32>
    tpu.vector_store %arg7[%c0_44, %c1_45, %c0_46], %68 {strides = array<i32>} : memref<3x18x256xf32, #tpu.memory_space<vmem>>, vector<3x16x256xf32>,
    %cst_47 = arith.constant 0.000000e+00 : f32
    %70 = vector.broadcast %cst_47 : f32 to vector<48x256xf32>
    %c0_48 = arith.constant 0 : index
    %c0_49 = arith.constant 0 : index
    %c0_50 = arith.constant 0 : index
    %71 = vector.load %arg7[%c0_48, %c0_49, %c0_50] : memref<3x18x256xf32, #tpu.memory_space<vmem>>, vector<3x16x256xf32>
    %72 = vector.shape_cast %71 : vector<3x16x256xf32> to vector<48x256xf32>
    %c0_51 = arith.constant 0 : index
    %c0_52 = arith.constant 0 : index
    %c0_53 = arith.constant 0 : index
    %73 = vector.load %arg4[%c0_51, %c0_52, %c0_53] : memref<3x256x256xf32, #tpu.memory_space<vmem>>, vector<1x256x256xf32>
    %74 = vector.shape_cast %73 : vector<1x256x256xf32> to vector<256x256xf32>
    %cst_54 = arith.constant dense<0.000000e+00> : vector<48x256xf32>
    %75 = tpu.matmul %72, %74, %cst_54 {dimension_numbers = #tpu.dot_dimension_numbers<[1], [0], [0], [1], [0, 0, 1, 1], [], []>} : vector<48x256xf32>, vector<256x256xf32>, vector<48x256xf32> -> vector<48x256xf32>
    %76 = arith.addf %70, %75 : vector<48x256xf32>
    %c0_55 = arith.constant 0 : index
    %c1_56 = arith.constant 1 : index
    %c0_57 = arith.constant 0 : index
    %77 = vector.load %arg7[%c0_55, %c1_56, %c0_57] : memref<3x18x256xf32, #tpu.memory_space<vmem>>, vector<3x16x256xf32>
    %78 = vector.shape_cast %77 : vector<3x16x256xf32> to vector<48x256xf32>
    %c1_58 = arith.constant 1 : index
    %c0_59 = arith.constant 0 : index
    %c0_60 = arith.constant 0 : index
    %79 = vector.load %arg4[%c1_58, %c0_59, %c0_60] : memref<3x256x256xf32, #tpu.memory_space<vmem>>, vector<1x256x256xf32>
    %80 = vector.shape_cast %79 : vector<1x256x256xf32> to vector<256x256xf32>
    %cst_61 = arith.constant dense<0.000000e+00> : vector<48x256xf32>
    %81 = tpu.matmul %78, %80, %cst_61 {dimension_numbers = #tpu.dot_dimension_numbers<[1], [0], [0], [1], [0, 0, 1, 1], [], []>} : vector<48x256xf32>, vector<256x256xf32>, vector<48x256xf32> -> vector<48x256xf32>
    %82 = arith.addf %76, %81 : vector<48x256xf32>
    %c0_62 = arith.constant 0 : index
    %c2_63 = arith.constant 2 : index
    %c0_64 = arith.constant 0 : index
    %83 = vector.load %arg7[%c0_62, %c2_63, %c0_64] : memref<3x18x256xf32, #tpu.memory_space<vmem>>, vector<3x16x256xf32>
    %84 = vector.shape_cast %83 : vector<3x16x256xf32> to vector<48x256xf32>
    %c2_65 = arith.constant 2 : index
    %c0_66 = arith.constant 0 : index
    %c0_67 = arith.constant 0 : index
    %85 = vector.load %arg4[%c2_65, %c0_66, %c0_67] : memref<3x256x256xf32, #tpu.memory_space<vmem>>, vector<1x256x256xf32>
    %86 = vector.shape_cast %85 : vector<1x256x256xf32> to vector<256x256xf32>
    %cst_68 = arith.constant dense<0.000000e+00> : vector<48x256xf32>
    %87 = tpu.matmul %84, %86, %cst_68 {dimension_numbers = #tpu.dot_dimension_numbers<[1], [0], [0], [1], [0, 0, 1, 1], [], []>} : vector<48x256xf32>, vector<256x256xf32>, vector<48x256xf32> -> vector<48x256xf32>
    %88 = arith.addf %82, %87 : vector<48x256xf32>
    %c0_69 = arith.constant 0 : index
    %c0_70 = arith.constant 0 : index
    %89 = vector.load %arg5[%c0_69, %c0_70] : memref<1x256xf32, #tpu.memory_space<vmem>>, vector<1x256xf32>
    %90 = vector.broadcast %89 : vector<1x256xf32> to vector<48x256xf32>
    %91 = arith.addf %88, %90 : vector<48x256xf32>
    %92 = arith.addf %91, %1 : vector<48x256xf32>
    %93 = vector.shape_cast %92 : vector<48x256xf32> to vector<3x16x256xf32>
    %c0_71 = arith.constant 0 : index
    %c0_72 = arith.constant 0 : index
    %c0_73 = arith.constant 0 : index
    %94 = vector.load %arg6[%c0_71, %c0_72, %c0_73] : memref<3x16x256xf32, #tpu.memory_space<vmem>>, vector<3x16x256xf32>
    tpu.vector_store %arg6[%c0_71, %c0_72, %c0_73], %93 {strides = array<i32>} : memref<3x16x256xf32, #tpu.memory_space<vmem>>, vector<3x16x256xf32>,
    return
  }
  func.func @transform_0(%arg0: i32) -> (i32, i32, i32) {
    %c0_i32 = arith.constant 0 : i32
    %c0_i32_0 = arith.constant 0 : i32
    %c0_i32_1 = arith.constant 0 : i32
    return %arg0, %c0_i32, %c0_i32_0 : i32, i32, i32
  }
  func.func @transform_1(%arg0: i32) -> (i32, i32, i32) {
    %c0_i32 = arith.constant 0 : i32
    %c0_i32_0 = arith.constant 0 : i32
    %c0_i32_1 = arith.constant 0 : i32
    %c0_i32_2 = arith.constant 0 : i32
    return %c0_i32, %c0_i32_0, %c0_i32_1 : i32, i32, i32
  }
  func.func @transform_2(%arg0: i32) -> (i32, i32) {
    %c0_i32 = arith.constant 0 : i32
    %c0_i32_0 = arith.constant 0 : i32
    %c0_i32_1 = arith.constant 0 : i32
    return %c0_i32, %c0_i32_0 : i32, i32
  }
  func.func @transform_3(%arg0: i32) -> (i32, i32, i32) {
    %c0_i32 = arith.constant 0 : i32
    %c0_i32_0 = arith.constant 0 : i32
    %c0_i32_1 = arith.constant 0 : i32
    %c0_i32_2 = arith.constant 0 : i32
    return %c0_i32, %c0_i32_0, %c0_i32_1 : i32, i32, i32
  }
  func.func @transform_4(%arg0: i32) -> (i32, i32) {
    %c0_i32 = arith.constant 0 : i32
    %c0_i32_0 = arith.constant 0 : i32
    %c0_i32_1 = arith.constant 0 : i32
    return %c0_i32, %c0_i32_0 : i32, i32
  }
  func.func @transform_5(%arg0: i32) -> (i32, i32, i32) {
    %c0_i32 = arith.constant 0 : i32
    %c0_i32_0 = arith.constant 0 : i32
    %c0_i32_1 = arith.constant 0 : i32
    return %arg0, %c0_i32, %c0_i32_0 : i32, i32, i32
  }
}

</mosaic_0001>

<llo_original>
// kernel: tpu_custom_call.1
$region0: #{tpu_custom_call.1}
  #allocation0 [shape = 'u32[]', space=smem, size = 0x4, offset = 0x4, fixed_abs, tag = 'smem constant byte address 0x4 - core index']
  #allocation1 [shape = 'u32[72,128]{1,0:T(1,128)}', space=vmem, size = 0x9000, scoped, tag = 'internal scratch']
  #allocation2 [shape = 'f32[3,18,256]{2,1,0:T(8,128)}', space=vmem, size = 0x12000, scoped, tag = 'scratch operand']
  %s0 = inlined_call_operand.hbm [shape: f32[6,18,256], index: 0, kind: input, shape index: {}]
  %s1 = inlined_call_operand.hbm [shape: f32[3,256,256], index: 1, kind: input, shape index: {}]
  %s2 = inlined_call_operand.hbm [shape: f32[1,256], index: 2, kind: input, shape index: {}]
  %s3 = inlined_call_operand.hbm [shape: f32[3,256,256], index: 3, kind: input, shape index: {}]
  %s4 = inlined_call_operand.vmem [shape: f32[1,256], index: 4, kind: input, shape index: {}]
  %s5 = inlined_call_operand.hbm [shape: f32[6,16,256], index: 5, kind: output, shape index: {}]
  %s6 = sld [smem:[#allocation0]]
  $region69: #{tpu_custom_call.1} parent=0
    _
  %s8 = ssub.s32 1, %s6
  %s9 = scalar_select 0, %s8, %s6
  $region1: #{tpu_custom_call.1} parent=0
    #allocation3 [shape = 'u8[147456]{0}', space=vmem, size = 0x24000, scoped, tag = 'input window, operand 0']
    #allocation4 [shape = 's32[2]{0}', space=sflag, size = 0x8, scoped, tag = 'scoped memory for tpu_custom_call.1']
    #allocation5 [shape = 's32[2]{0}', space=sflag, size = 0x8, scoped, tag = 'scoped memory for tpu_custom_call.1']
    #allocation6 [shape = 'u8[786432]{0}', space=vmem, size = 0xc0000, scoped, tag = 'input window, operand 1, single buffered']
    #allocation7 [shape = 's32[1]{0}', space=sflag, size = 0x4, scoped, tag = 'scoped memory for tpu_custom_call.1']
    #allocation8 [shape = 'u8[1024]{0}', space=vmem, size = 0x400, scoped, tag = 'input window, operand 2, single buffered']
    #allocation9 [shape = 'u8[786432]{0}', space=vmem, size = 0xc0000, scoped, tag = 'input window, operand 3, single buffered']
    #allocation10 [shape = 's32[1]{0}', space=sflag, size = 0x4, scoped, tag = 'scoped memory for tpu_custom_call.1']
    #allocation11 [shape = 'u8[98304]{0}', space=vmem, size = 0x18000, scoped, tag = 'output window, operand 0']
    %10 = vsyncpa [#allocation4], 0
    %s11 = scalar_lea.sflag [#allocation4], 1
    %12 = vsyncpa %s11, 0
    %13 = vsyncpa [#allocation7], 0
    %14 = vsyncpa [#allocation10], 0
    %15 = vsyncpa [#allocation5], 0
    %s16 = scalar_lea.sflag [#allocation5], 1
    %17 = vsyncpa %s16, 0
    loop: start=0, step=1, limit=4
    $region2: #{tpu_custom_call.1} parent=1 // loop_pre_header
      _
    $region3: #{tpu_custom_call.1} parent=1 // loop_header
      %s19 = sphi 0, %s23
      %p20 = scmp.ge.s32.totalorder %s19, 4
      %s29 = sphi 0, %s31
      %s32 = sphi 0, %s29
      %s33 = sphi 0, %s32
      %s49 = sphi 0, %s33
      %s53 = sphi 0, %s53
      %s55 = sphi 0, %s53
      %s56 = sphi 0, %s55
      %s70 = sphi 0, %s56
      %s74 = sphi 0, %s74
      %s76 = sphi 0, %s74
      %s77 = sphi 0, %s76
      %s91 = sphi 0, %s77
      %s95 = sphi 0, %s95
      %s97 = sphi 0, %s95
      %s98 = sphi 0, %s97
      %s112 = sphi 0, %s98
      %s116 = sphi 0, %s116
      %s118 = sphi 0, %s116
      %s119 = sphi 0, %s118
      %s133 = sphi 0, %s119
      %s139 = sphi 0, %s141
      %s142 = sphi 0, %s139
      %s143 = sphi 0, %s142
      %s159 = sphi 0, %s143
    $region4: #{tpu_custom_call.1} parent=1 // loop_header_branch
      %22 = sbr.rel (%p20) target = $region8
    $region5: #{tpu_custom_call.1} parent=1 // loop_body
      %s24 = ssub.s32 %s19, 1
      %s25 = ssub.s32 %s19, 2
      %s26 = sadd.s32 %s19, 1
      %s27 = ssub.s32 %s19, %s26
      %p28 = scmp.eq.s32.totalorder %s27, 0
      %s30 = sadd.s32 %s29, 1
      %s31 = scalar_select %p28, %s29, %s30
      %p34 = pneg %p28
      %p35 = scmp.eq.s32.totalorder %s19, 1
      %p36 = por %p34, %p35
      %p37 = scmp.ne.s32.totalorder %s29, %s32
      %p38 = scmp.eq.s32.totalorder %s19, 0
      %p39 = por %p37, %p38
      %p40 = scmp.ne.s32.totalorder %s29, %s32
      %p41 = scmp.eq.s32.totalorder %s24, 1
      %p42 = por %p40, %p41
      %p43 = scmp.ne.s32.totalorder %s32, %s33
      %p44 = scmp.eq.s32.totalorder %s24, 0
      %p45 = por %p43, %p44
      %p46 = scmp.ne.s32.totalorder %s32, %s33
      %p47 = scmp.eq.s32.totalorder %s25, 1
      %p48 = por %p46, %p47
      %p50 = scmp.ne.s32.totalorder %s33, %s49
      %p51 = scmp.eq.s32.totalorder %s25, 0
      %p52 = por %p50, %p51
      %s54 = sadd.s32 %s53, 1
      %p57 = scmp.eq.s32.totalorder %s19, 1
      %p58 = scmp.ne.s32.totalorder %s53, %s55
      %p59 = scmp.eq.s32.totalorder %s19, 0
      %p60 = por %p58, %p59
      %p61 = scmp.ne.s32.totalorder %s53, %s55
      %p62 = scmp.eq.s32.totalorder %s24, 1
      %p63 = por %p61, %p62
      %p64 = scmp.ne.s32.totalorder %s55, %s56
      %p65 = scmp.eq.s32.totalorder %s24, 0
      %p66 = por %p64, %p65
      %p67 = scmp.ne.s32.totalorder %s55, %s56
      %p68 = scmp.eq.s32.totalorder %s25, 1
      %p69 = por %p67, %p68
      %p71 = scmp.ne.s32.totalorder %s56, %s70
      %p72 = scmp.eq.s32.totalorder %s25, 0
      %p73 = por %p71, %p72
      %s75 = sadd.s32 %s74, 1
      %p78 = scmp.eq.s32.totalorder %s19, 1
      %p79 = scmp.ne.s32.totalorder %s74, %s76
      %p80 = scmp.eq.s32.totalorder %s19, 0
      %p81 = por %p79, %p80
      %p82 = scmp.ne.s32.totalorder %s74, %s76
      %p83 = scmp.eq.s32.totalorder %s24, 1
      %p84 = por %p82, %p83
      %p85 = scmp.ne.s32.totalorder %s76, %s77
      %p86 = scmp.eq.s32.totalorder %s24, 0
      %p87 = por %p85, %p86
      %p88 = scmp.ne.s32.totalorder %s76, %s77
      %p89 = scmp.eq.s32.totalorder %s25, 1
      %p90 = por %p88, %p89
      %p92 = scmp.ne.s32.totalorder %s77, %s91
      %p93 = scmp.eq.s32.totalorder %s25, 0
      %p94 = por %p92, %p93
      %s96 = sadd.s32 %s95, 1
      %p99 = scmp.eq.s32.totalorder %s19, 1
      %p100 = scmp.ne.s32.totalorder %s95, %s97
      %p101 = scmp.eq.s32.totalorder %s19, 0
      %p102 = por %p100, %p101
      %p103 = scmp.ne.s32.totalorder %s95, %s97
      %p104 = scmp.eq.s32.totalorder %s24, 1
      %p105 = por %p103, %p104
      %p106 = scmp.ne.s32.totalorder %s97, %s98
      %p107 = scmp.eq.s32.totalorder %s24, 0
      %p108 = por %p106, %p107
      %p109 = scmp.ne.s32.totalorder %s97, %s98
      %p110 = scmp.eq.s32.totalorder %s25, 1
      %p111 = por %p109, %p110
      %p113 = scmp.ne.s32.totalorder %s98, %s112
      %p114 = scmp.eq.s32.totalorder %s25, 0
      %p115 = por %p113, %p114
      %s117 = sadd.s32 %s116, 1
      %p120 = scmp.eq.s32.totalorder %s19, 1
      %p121 = scmp.ne.s32.totalorder %s116, %s118
      %p122 = scmp.eq.s32.totalorder %s19, 0
      %p123 = por %p121, %p122
      %p124 = scmp.ne.s32.totalorder %s116, %s118
      %p125 = scmp.eq.s32.totalorder %s24, 1
      %p126 = por %p124, %p125
      %p127 = scmp.ne.s32.totalorder %s118, %s119
      %p128 = scmp.eq.s32.totalorder %s24, 0
      %p129 = por %p127, %p128
      %p130 = scmp.ne.s32.totalorder %s118, %s119
      %p131 = scmp.eq.s32.totalorder %s25, 1
      %p132 = por %p130, %p131
      %p134 = scmp.ne.s32.totalorder %s119, %s133
      %p135 = scmp.eq.s32.totalorder %s25, 0
      %p136 = por %p134, %p135
      %s137 = ssub.s32 %s19, %s26
      %p138 = scmp.eq.s32.totalorder %s137, 0
      %s140 = sadd.s32 %s139, 1
      %s141 = scalar_select %p138, %s139, %s140
      %p144 = pneg %p138
      %p145 = scmp.eq.s32.totalorder %s19, 1
      %p146 = por %p144, %p145
      %p147 = scmp.ne.s32.totalorder %s139, %s142
      %p148 = scmp.eq.s32.totalorder %s19, 0
      %p149 = por %p147, %p148
      %p150 = scmp.ne.s32.totalorder %s139, %s142
      %p151 = scmp.eq.s32.totalorder %s24, 1
      %p152 = por %p150, %p151
      %p153 = scmp.ne.s32.totalorder %s142, %s143
      %p154 = scmp.eq.s32.totalorder %s24, 0
      %p155 = por %p153, %p154
      %p156 = scmp.ne.s32.totalorder %s142, %s143
      %p157 = scmp.eq.s32.totalorder %s25, 1
      %p158 = por %p156, %p157
      %p160 = scmp.ne.s32.totalorder %s143, %s159
      %p161 = scmp.eq.s32.totalorder %s25, 0
      %p162 = por %p160, %p161
      %p163 = scmp.le.s32.totalorder 1, %s19
      %p164 = scmp.lt.s32.totalorder %s19, 3
      %p165 = pnand %p163, %p164
      %p166 = pneg %p165
      // Predicated region
      $region9: #{tpu_custom_call.1} parent=5 // pred_check
        _
      $region10: #{tpu_custom_call.1} parent=5 // pred_check_branch
        %168 = sbr.rel (%p165) target = $region12
      $region11: #{tpu_custom_call.1} parent=5 // pred_region
        %s169 = ssub.s32 %s19, 1
        // Predicated region
        $region13: #{tpu_custom_call.1} parent=11 // pred_check
          %p170 = pneg %p66
        $region14: #{tpu_custom_call.1} parent=11 // pred_check_branch
          %172 = sbr.rel (%p170) target = $region16
        $region15: #{tpu_custom_call.1} parent=11 // pred_region
          %174 = vsyncadd [#allocation7], 0
          %s175 = sshll.u32 %s1, 4
          %s176 = int_to_ptr.hbm [resolvable:$true] %s175
          %s177 = sshll.u32 [#allocation6], 4
          %s178 = int_to_ptr.vmem [resolvable:$true] %s177
          %183 = dma.hbm_to_vmem [thread:$0]  %s176, 24576, %s178, [#allocation7], 256, 256, 16
        $region16: #{tpu_custom_call.1} parent=11 // pred_fallthru
          _
        // Predicated region
        $region17: #{tpu_custom_call.1} parent=11 // pred_check
          %p184 = pneg %p87
        $region18: #{tpu_custom_call.1} parent=11 // pred_check_branch
          %186 = sbr.rel (%p184) target = $region20
        $region19: #{tpu_custom_call.1} parent=11 // pred_region
          %188 = vsyncadd [#allocation7], 0
          %s190 = sshll.u32 %s2, 4
          %s191 = int_to_ptr.hbm [resolvable:$true] %s190
          %s192 = sshll.u32 [#allocation8], 4
          %s193 = int_to_ptr.vmem [resolvable:$true] %s192
          %195 = dma.hbm_to_vmem [thread:$0]  %s191, 32, %s193, [#allocation7]
        $region20: #{tpu_custom_call.1} parent=11 // pred_fallthru
          _
        // Predicated region
        $region21: #{tpu_custom_call.1} parent=11 // pred_check
          %p196 = pneg %p108
        $region22: #{tpu_custom_call.1} parent=11 // pred_check_branch
          %198 = sbr.rel (%p196) target = $region24
        $region23: #{tpu_custom_call.1} parent=11 // pred_region
          %200 = vsyncadd [#allocation10], 0
          %s201 = sshll.u32 %s3, 4
          %s202 = int_to_ptr.hbm [resolvable:$true] %s201
          %s203 = sshll.u32 [#allocation9], 4
          %s204 = int_to_ptr.vmem [resolvable:$true] %s203
          %209 = dma.hbm_to_vmem [thread:$0]  %s202, 24576, %s204, [#allocation10], 256, 256, 16
        $region24: #{tpu_custom_call.1} parent=11 // pred_fallthru
          _
        // Predicated region
        $region25: #{tpu_custom_call.1} parent=11 // pred_check
          %p210 = pneg %p129
        $region26: #{tpu_custom_call.1} parent=11 // pred_check_branch
          %212 = sbr.rel (%p210) target = $region28
        $region27: #{tpu_custom_call.1} parent=11 // pred_region
          _
        $region28: #{tpu_custom_call.1} parent=11 // pred_fallthru
          _
      $region12: #{tpu_custom_call.1} parent=5 // pred_fallthru
        _
      %p213 = scmp.lt.s32.totalorder %s19, 2
      // Predicated region
      $region29: #{tpu_custom_call.1} parent=5 // pred_check
        %p214 = pneg %p213
      $region30: #{tpu_custom_call.1} parent=5 // pred_check_branch
        %216 = sbr.rel (%p214) target = $region32
      $region31: #{tpu_custom_call.1} parent=5 // pred_region
        // Predicated region
        $region33: #{tpu_custom_call.1} parent=31 // pred_check
          %p217 = pneg %p39
        $region34: #{tpu_custom_call.1} parent=31 // pred_check_branch
          %219 = sbr.rel (%p217) target = $region36
        $region35: #{tpu_custom_call.1} parent=31 // pred_region
          %s220 = sand.u32 %s29, 1
          %s221 = scalar_lea.sflag [#allocation4], %s220
          %s222 = sand.u32 %s29, 1
          %s223 = smul.addr %s222, 144
          %s224 = scalar_lea.vmem [#allocation3], %s223
          %s225 = smul.u32 3, %s19
          %227 = vsyncadd %s221, 0
          %s228 = smul.addr %s225, 6
          %s229 = smul.addr %s228, 8
          %s230 = scalar_lea.hbm %s0, %s229
          %s231 = sshll.u32 %s230, 4
          %s232 = int_to_ptr.hbm [resolvable:$true] %s231
          %s233 = sshll.u32 %s224, 4
          %s234 = int_to_ptr.vmem [resolvable:$true] %s233
          %239 = dma.hbm_to_vmem [thread:$0]  %s232, 2304, %s234, %s221, 256, 256, 16
        $region36: #{tpu_custom_call.1} parent=31 // pred_fallthru
          _
      $region32: #{tpu_custom_call.1} parent=5 // pred_fallthru
        _
      %p240 = scmp.le.s32.totalorder 1, %s19
      %p241 = scmp.lt.s32.totalorder %s19, 3
      %p242 = pnand %p240, %p241
      %p243 = pneg %p242
      // Predicated region
      $region37: #{tpu_custom_call.1} parent=5 // pred_check
        _
      $region38: #{tpu_custom_call.1} parent=5 // pred_check_branch
        %245 = sbr.rel (%p242) target = $region40
      $region39: #{tpu_custom_call.1} parent=5 // pred_region
        %s246 = ssub.s32 %s19, 1
        %s247 = sand.u32 %s32, 1
        %s248 = scalar_lea.sflag [#allocation4], %s247
        %s249 = sand.u32 %s32, 1
        %s250 = smul.addr %s249, 144
        %s251 = scalar_lea.vmem [#allocation3], %s250
        // Predicated region
        $region41: #{tpu_custom_call.1} parent=39 // pred_check
          %p252 = pneg %p45
        $region42: #{tpu_custom_call.1} parent=39 // pred_check_branch
          %254 = sbr.rel (%p252) target = $region44
        $region43: #{tpu_custom_call.1} parent=39 // pred_region
          %256 = dma.done %s248, 2304
        $region44: #{tpu_custom_call.1} parent=39 // pred_fallthru
          _
        // Predicated region
        $region45: #{tpu_custom_call.1} parent=39 // pred_check
          %p257 = pneg %p66
        $region46: #{tpu_custom_call.1} parent=39 // pred_check_branch
          %259 = sbr.rel (%p257) target = $region48
        $region47: #{tpu_custom_call.1} parent=39 // pred_region
          %261 = dma.done [#allocation7], 24576
        $region48: #{tpu_custom_call.1} parent=39 // pred_fallthru
          _
        // Predicated region
        $region49: #{tpu_custom_call.1} parent=39 // pred_check
          %p262 = pneg %p87
        $region50: #{tpu_custom_call.1} parent=39 // pred_check_branch
          %264 = sbr.rel (%p262) target = $region52
        $region51: #{tpu_custom_call.1} parent=39 // pred_region
          %266 = dma.done [#allocation7], 32
        $region52: #{tpu_custom_call.1} parent=39 // pred_fallthru
          _
        // Predicated region
        $region53: #{tpu_custom_call.1} parent=39 // pred_check
          %p267 = pneg %p108
        $region54: #{tpu_custom_call.1} parent=39 // pred_check_branch
          %269 = sbr.rel (%p267) target = $region56
        $region55: #{tpu_custom_call.1} parent=39 // pred_region
          %271 = dma.done [#allocation10], 24576
        $region56: #{tpu_custom_call.1} parent=39 // pred_fallthru
          _
        %s272 = sand.u32 %s32, 1
        %s273 = scalar_lea.sflag [#allocation4], %s272
        %s274 = sand.u32 %s32, 1
        %s275 = smul.addr %s274, 144
        %s276 = scalar_lea.vmem [#allocation3], %s275
        %p277 = pneg %p45
        %p278 = pneg %p42
        %p279 = pneg %p66
        %p280 = pneg %p63
        %p281 = pneg %p87
        %p282 = pneg %p84
        %p283 = pneg %p108
        %p284 = pneg %p105
        %p285 = pneg %p129
        %p286 = pneg %p126
        %p287 = pneg %p155
        %p288 = pneg %p152
        %s289 = sand.u32 %s142, 1
        %s290 = scalar_lea.sflag [#allocation5], %s289
        %s291 = sand.u32 %s142, 1
        %s292 = smul.addr %s291, 96
        %s293 = scalar_lea.vmem [#allocation11], %s292
        %s294 = smul.u32 3, %s24
        %s295 = smul.u32 3, %s24
        %v296 = vld [vmem:[%s251] sm:$0xfe]
        %v297 = vld [vmem:[%s251 + $0x8] sm:$0xfe]
        %v298 = vld [vmem:[%s251 + $0x10] sm:$0xff]
        %v299 = vld [vmem:[%s251 + $0x18] sm:$0xff]
        %v300 = vld [vmem:[%s251 + $0x20] sm:$0x1]
        %v301 = vld [vmem:[%s251 + $0x28] sm:$0x1]
        %v302 = vld [vmem:[%s251 + $0x30] sm:$0xfe]
        %v303 = vld [vmem:[%s251 + $0x38] sm:$0xfe]
        %v304 = vld [vmem:[%s251 + $0x40] sm:$0xff]
        %v305 = vld [vmem:[%s251 + $0x48] sm:$0xff]
        %v306 = vld [vmem:[%s251 + $0x50] sm:$0x1]
        %v307 = vld [vmem:[%s251 + $0x58] sm:$0x1]
        %v308 = vld [vmem:[%s251 + $0x60] sm:$0xfe]
        %v309 = vld [vmem:[%s251 + $0x68] sm:$0xfe]
        %v310 = vld [vmem:[%s251 + $0x70] sm:$0xff]
        %v311 = vld [vmem:[%s251 + $0x78] sm:$0xff]
        %v312 = vld [vmem:[%s251 + $0x80] sm:$0x1]
        %v313 = vld [vmem:[%s251 + $0x88] sm:$0x1]
        %vm332 = vcmask 1046528
        %v333 = vrot.slane %v296, 1
        %v334 = vrot.slane %v298, 1
        %v335 = vsel %vm332, %v333, %v334
        %v336 = vrot.slane %v297, 1
        %v337 = vrot.slane %v299, 1
        %v338 = vsel %vm332, %v336, %v337
        %v339 = vrot.slane %v300, 1
        %v340 = vsel %vm332, %v334, %v339
        %v341 = vrot.slane %v301, 1
        %v342 = vsel %vm332, %v337, %v341
        %v343 = vrot.slane %v302, 1
        %v344 = vrot.slane %v304, 1
        %v345 = vsel %vm332, %v343, %v344
        %v346 = vrot.slane %v303, 1
        %v347 = vrot.slane %v305, 1
        %v348 = vsel %vm332, %v346, %v347
        %v349 = vrot.slane %v306, 1
        %v350 = vsel %vm332, %v344, %v349
        %v351 = vrot.slane %v307, 1
        %v352 = vsel %vm332, %v347, %v351
        %v353 = vrot.slane %v308, 1
        %v354 = vrot.slane %v310, 1
        %v355 = vsel %vm332, %v353, %v354
        %v356 = vrot.slane %v309, 1
        %v357 = vrot.slane %v311, 1
        %v358 = vsel %vm332, %v356, %v357
        %v359 = vrot.slane %v312, 1
        %v360 = vsel %vm332, %v354, %v359
        %v361 = vrot.slane %v313, 1
        %v362 = vsel %vm332, %v357, %v361
        %v375 = vld [vmem:[%s251] sm:$0xff]
        %v376 = vld [vmem:[%s251 + $0x8] sm:$0xff]
        %v377 = vld [vmem:[%s251 + $0x30] sm:$0xff]
        %v378 = vld [vmem:[%s251 + $0x38] sm:$0xff]
        %v379 = vld [vmem:[%s251 + $0x60] sm:$0xff]
        %v380 = vld [vmem:[%s251 + $0x68] sm:$0xff]
        %v381 = vld [vmem:[#allocation6] sm:$0xff]
        %v382 = vld [vmem:[#allocation6 + $0x8] sm:$0xff]
        %v383 = vld [vmem:[#allocation6 + $0x10] sm:$0xff]
        %v384 = vld [vmem:[#allocation6 + $0x18] sm:$0xff]
        %v385 = vld [vmem:[#allocation6 + $0x20] sm:$0xff]
        %v386 = vld [vmem:[#allocation6 + $0x28] sm:$0xff]
        %v387 = vld [vmem:[#allocation6 + $0x30] sm:$0xff]
        %v388 = vld [vmem:[#allocation6 + $0x38] sm:$0xff]
        %v389 = vld [vmem:[#allocation6 + $0x40] sm:$0xff]
        %v390 = vld [vmem:[#allocation6 + $0x48] sm:$0xff]
        %v391 = vld [vmem:[#allocation6 + $0x50] sm:$0xff]
        %v392 = vld [vmem:[#allocation6 + $0x58] sm:$0xff]
        %v393 = vld [vmem:[#allocation6 + $0x60] sm:$0xff]
        %v394 = vld [vmem:[#allocation6 + $0x68] sm:$0xff]
        %v395 = vld [vmem:[#allocation6 + $0x70] sm:$0xff]
        %v396 = vld [vmem:[#allocation6 + $0x78] sm:$0xff]
        %v397 = vld [vmem:[#allocation6 + $0x80] sm:$0xff]
        %v398 = vld [vmem:[#allocation6 + $0x88] sm:$0xff]
        %v399 = vld [vmem:[#allocation6 + $0x90] sm:$0xff]
        %v400 = vld [vmem:[#allocation6 + $0x98] sm:$0xff]
        %v401 = vld [vmem:[#allocation6 + $0xa0] sm:$0xff]
        %v402 = vld [vmem:[#allocation6 + $0xa8] sm:$0xff]
        %v403 = vld [vmem:[#allocation6 + $0xb0] sm:$0xff]
        %v404 = vld [vmem:[#allocation6 + $0xb8] sm:$0xff]
        %v405 = vld [vmem:[#allocation6 + $0xc0] sm:$0xff]
        %v406 = vld [vmem:[#allocation6 + $0xc8] sm:$0xff]
        %v407 = vld [vmem:[#allocation6 + $0xd0] sm:$0xff]
        %v408 = vld [vmem:[#allocation6 + $0xd8] sm:$0xff]
        %v409 = vld [vmem:[#allocation6 + $0xe0] sm:$0xff]
        %v410 = vld [vmem:[#allocation6 + $0xe8] sm:$0xff]
        %v411 = vld [vmem:[#allocation6 + $0xf0] sm:$0xff]
        %v412 = vld [vmem:[#allocation6 + $0xf8] sm:$0xff]
        %v413 = vld [vmem:[#allocation6 + $0x100] sm:$0xff]
        %v414 = vld [vmem:[#allocation6 + $0x108] sm:$0xff]
        %v415 = vld [vmem:[#allocation6 + $0x110] sm:$0xff]
        %v416 = vld [vmem:[#allocation6 + $0x118] sm:$0xff]
        %v417 = vld [vmem:[#allocation6 + $0x120] sm:$0xff]
        %v418 = vld [vmem:[#allocation6 + $0x128] sm:$0xff]
        %v419 = vld [vmem:[#allocation6 + $0x130] sm:$0xff]
        %v420 = vld [vmem:[#allocation6 + $0x138] sm:$0xff]
        %v421 = vld [vmem:[#allocation6 + $0x140] sm:$0xff]
        %v422 = vld [vmem:[#allocation6 + $0x148] sm:$0xff]
        %v423 = vld [vmem:[#allocation6 + $0x150] sm:$0xff]
        %v424 = vld [vmem:[#allocation6 + $0x158] sm:$0xff]
        %v425 = vld [vmem:[#allocation6 + $0x160] sm:$0xff]
        %v426 = vld [vmem:[#allocation6 + $0x168] sm:$0xff]
        %v427 = vld [vmem:[#allocation6 + $0x170] sm:$0xff]
        %v428 = vld [vmem:[#allocation6 + $0x178] sm:$0xff]
        %v429 = vld [vmem:[#allocation6 + $0x180] sm:$0xff]
        %v430 = vld [vmem:[#allocation6 + $0x188] sm:$0xff]
        %v431 = vld [vmem:[#allocation6 + $0x190] sm:$0xff]
        %v432 = vld [vmem:[#allocation6 + $0x198] sm:$0xff]
        %v433 = vld [vmem:[#allocation6 + $0x1a0] sm:$0xff]
        %v434 = vld [vmem:[#allocation6 + $0x1a8] sm:$0xff]
        %v435 = vld [vmem:[#allocation6 + $0x1b0] sm:$0xff]
        %v436 = vld [vmem:[#allocation6 + $0x1b8] sm:$0xff]
        %v437 = vld [vmem:[#allocation6 + $0x1c0] sm:$0xff]
        %v438 = vld [vmem:[#allocation6 + $0x1c8] sm:$0xff]
        %v439 = vld [vmem:[#allocation6 + $0x1d0] sm:$0xff]
        %v440 = vld [vmem:[#allocation6 + $0x1d8] sm:$0xff]
        %v441 = vld [vmem:[#allocation6 + $0x1e0] sm:$0xff]
        %v442 = vld [vmem:[#allocation6 + $0x1e8] sm:$0xff]
        %v443 = vld [vmem:[#allocation6 + $0x1f0] sm:$0xff]
        %v444 = vld [vmem:[#allocation6 + $0x1f8] sm:$0xff]
        %s445 = scalar_lea.vmem [#allocation6], 512
        %v446 = vld [vmem:[%s445] sm:$0xff]
        %v447 = vld [vmem:[%s445 + $0x8] sm:$0xff]
        %v448 = vld [vmem:[%s445 + $0x10] sm:$0xff]
        %v449 = vld [vmem:[%s445 + $0x18] sm:$0xff]
        %v450 = vld [vmem:[%s445 + $0x20] sm:$0xff]
        %v451 = vld [vmem:[%s445 + $0x28] sm:$0xff]
        %v452 = vld [vmem:[%s445 + $0x30] sm:$0xff]
        %v453 = vld [vmem:[%s445 + $0x38] sm:$0xff]
        %v454 = vld [vmem:[%s445 + $0x40] sm:$0xff]
        %v455 = vld [vmem:[%s445 + $0x48] sm:$0xff]
        %v456 = vld [vmem:[%s445 + $0x50] sm:$0xff]
        %v457 = vld [vmem:[%s445 + $0x58] sm:$0xff]
        %v458 = vld [vmem:[%s445 + $0x60] sm:$0xff]
        %v459 = vld [vmem:[%s445 + $0x68] sm:$0xff]
        %v460 = vld [vmem:[%s445 + $0x70] sm:$0xff]
        %v461 = vld [vmem:[%s445 + $0x78] sm:$0xff]
        %v462 = vld [vmem:[%s445 + $0x80] sm:$0xff]
        %v463 = vld [vmem:[%s445 + $0x88] sm:$0xff]
        %v464 = vld [vmem:[%s445 + $0x90] sm:$0xff]
        %v465 = vld [vmem:[%s445 + $0x98] sm:$0xff]
        %v466 = vld [vmem:[%s445 + $0xa0] sm:$0xff]
        %v467 = vld [vmem:[%s445 + $0xa8] sm:$0xff]
        %v468 = vld [vmem:[%s445 + $0xb0] sm:$0xff]
        %v469 = vld [vmem:[%s445 + $0xb8] sm:$0xff]
        %v470 = vld [vmem:[%s445 + $0xc0] sm:$0xff]
        %v471 = vld [vmem:[%s445 + $0xc8] sm:$0xff]
        %v472 = vld [vmem:[%s445 + $0xd0] sm:$0xff]
        %v473 = vld [vmem:[%s445 + $0xd8] sm:$0xff]
        %v474 = vld [vmem:[%s445 + $0xe0] sm:$0xff]
        %v475 = vld [vmem:[%s445 + $0xe8] sm:$0xff]
        %v476 = vld [vmem:[%s445 + $0xf0] sm:$0xff]
        %v477 = vld [vmem:[%s445 + $0xf8] sm:$0xff]
        %v478 = vld [vmem:[%s445 + $0x100] sm:$0xff]
        %v479 = vld [vmem:[%s445 + $0x108] sm:$0xff]
        %v480 = vld [vmem:[%s445 + $0x110] sm:$0xff]
        %v481 = vld [vmem:[%s445 + $0x118] sm:$0xff]
        %v482 = vld [vmem:[%s445 + $0x120] sm:$0xff]
        %v483 = vld [vmem:[%s445 + $0x128] sm:$0xff]
        %v484 = vld [vmem:[%s445 + $0x130] sm:$0xff]
        %v485 = vld [vmem:[%s445 + $0x138] sm:$0xff]
        %v486 = vld [vmem:[%s445 + $0x140] sm:$0xff]
        %v487 = vld [vmem:[%s445 + $0x148] sm:$0xff]
        %v488 = vld [vmem:[%s445 + $0x150] sm:$0xff]
        %v489 = vld [vmem:[%s445 + $0x158] sm:$0xff]
        %v490 = vld [vmem:[%s445 + $0x160] sm:$0xff]
        %v491 = vld [vmem:[%s445 + $0x168] sm:$0xff]
        %v492 = vld [vmem:[%s445 + $0x170] sm:$0xff]
        %v493 = vld [vmem:[%s445 + $0x178] sm:$0xff]
        %v494 = vld [vmem:[%s445 + $0x180] sm:$0xff]
        %v495 = vld [vmem:[%s445 + $0x188] sm:$0xff]
        %v496 = vld [vmem:[%s445 + $0x190] sm:$0xff]
        %v497 = vld [vmem:[%s445 + $0x198] sm:$0xff]
        %v498 = vld [vmem:[%s445 + $0x1a0] sm:$0xff]
        %v499 = vld [vmem:[%s445 + $0x1a8] sm:$0xff]
        %v500 = vld [vmem:[%s445 + $0x1b0] sm:$0xff]
        %v501 = vld [vmem:[%s445 + $0x1b8] sm:$0xff]
        %v502 = vld [vmem:[%s445 + $0x1c0] sm:$0xff]
        %v503 = vld [vmem:[%s445 + $0x1c8] sm:$0xff]
        %v504 = vld [vmem:[%s445 + $0x1d0] sm:$0xff]
        %v505 = vld [vmem:[%s445 + $0x1d8] sm:$0xff]
        %v506 = vld [vmem:[%s445 + $0x1e0] sm:$0xff]
        %v507 = vld [vmem:[%s445 + $0x1e8] sm:$0xff]
        %v508 = vld [vmem:[%s445 + $0x1f0] sm:$0xff]
        %v509 = vld [vmem:[%s445 + $0x1f8] sm:$0xff]
        %510 = vmatpush.msra.mxu0 %v476
        %511 = vmatpush.msra.mxu0 %v474
        %512 = vmatpush.msra.mxu0 %v472
        %513 = vmatpush.msra.mxu0 %v470
        %514 = vmatpush.msra.mxu0 %v468
        %515 = vmatpush.msra.mxu0 %v466
        %516 = vmatpush.msra.mxu0 %v464
        %517 = vmatpush.msra.mxu0 %v462
        %518 = vmatpush.msra.mxu0 %v460
        %519 = vmatpush.msra.mxu0 %v458
        %520 = vmatpush.msra.mxu0 %v456
        %521 = vmatpush.msra.mxu0 %v454
        %522 = vmatpush.msra.mxu0 %v452
        %523 = vmatpush.msra.mxu0 %v450
        %524 = vmatpush.msra.mxu0 %v448
        %525 = vmatpush.msra.mxu0 %v446
        %526 = vmatmul.f32.gmra.mxu0 %v335
        %v527 = vpop.f32.mrf.mxu0
        %v528 = vadd.f32 0.0, %v527
        %529 = vmatmul.f32.gmra.mxu0 %v340
        %v530 = vpop.f32.mrf.mxu0
        %v531 = vadd.f32 0.0, %v530
        %532 = vmatmul.f32.gmra.mxu0 %v345
        %v533 = vpop.f32.mrf.mxu0
        %v534 = vadd.f32 0.0, %v533
        %535 = vmatmul.f32.gmra.mxu0 %v350
        %v536 = vpop.f32.mrf.mxu0
        %v537 = vadd.f32 0.0, %v536
        %538 = vmatmul.f32.gmra.mxu0 %v355
        %v539 = vpop.f32.mrf.mxu0
        %v540 = vadd.f32 0.0, %v539
        %541 = vmatmul.f32.gmra.mxu0 %v360
        %v542 = vpop.f32.mrf.mxu0
        %v543 = vadd.f32 0.0, %v542
        %544 = vdwg.mxu0
        %545 = vmatpush.msra.mxu0 %v508
        %546 = vmatpush.msra.mxu0 %v506
        %547 = vmatpush.msra.mxu0 %v504
        %548 = vmatpush.msra.mxu0 %v502
        %549 = vmatpush.msra.mxu0 %v500
        %550 = vmatpush.msra.mxu0 %v498
        %551 = vmatpush.msra.mxu0 %v496
        %552 = vmatpush.msra.mxu0 %v494
        %553 = vmatpush.msra.mxu0 %v492
        %554 = vmatpush.msra.mxu0 %v490
        %555 = vmatpush.msra.mxu0 %v488
        %556 = vmatpush.msra.mxu0 %v486
        %557 = vmatpush.msra.mxu0 %v484
        %558 = vmatpush.msra.mxu0 %v482
        %559 = vmatpush.msra.mxu0 %v480
        %560 = vmatpush.msra.mxu0 %v478
        %561 = vmatmul.f32.gmra.mxu0 %v338
        %v562 = vpop.f32.mrf.mxu0
        %v563 = vadd.f32 %v528, %v562
        %564 = vmatmul.f32.gmra.mxu0 %v342
        %v565 = vpop.f32.mrf.mxu0
        %v566 = vadd.f32 %v531, %v565
        %567 = vmatmul.f32.gmra.mxu0 %v348
        %v568 = vpop.f32.mrf.mxu0
        %v569 = vadd.f32 %v534, %v568
        %570 = vmatmul.f32.gmra.mxu0 %v352
        %v571 = vpop.f32.mrf.mxu0
        %v572 = vadd.f32 %v537, %v571
        %573 = vmatmul.f32.gmra.mxu0 %v358
        %v574 = vpop.f32.mrf.mxu0
        %v575 = vadd.f32 %v540, %v574
        %576 = vmatmul.f32.gmra.mxu0 %v362
        %v577 = vpop.f32.mrf.mxu0
        %v578 = vadd.f32 %v543, %v577
        %579 = vdwg.mxu0
        %580 = vmatpush.msra.mxu0 %v477
        %581 = vmatpush.msra.mxu0 %v475
        %582 = vmatpush.msra.mxu0 %v473
        %583 = vmatpush.msra.mxu0 %v471
        %584 = vmatpush.msra.mxu0 %v469
        %585 = vmatpush.msra.mxu0 %v467
        %586 = vmatpush.msra.mxu0 %v465
        %587 = vmatpush.msra.mxu0 %v463
        %588 = vmatpush.msra.mxu0 %v461
        %589 = vmatpush.msra.mxu0 %v459
        %590 = vmatpush.msra.mxu0 %v457
        %591 = vmatpush.msra.mxu0 %v455
        %592 = vmatpush.msra.mxu0 %v453
        %593 = vmatpush.msra.mxu0 %v451
        %594 = vmatpush.msra.mxu0 %v449
        %595 = vmatpush.msra.mxu0 %v447
        %596 = vmatmul.f32.gmra.mxu0 %v335
        %v597 = vpop.f32.mrf.mxu0
        %v598 = vadd.f32 0.0, %v597
        %599 = vmatmul.f32.gmra.mxu0 %v340
        %v600 = vpop.f32.mrf.mxu0
        %v601 = vadd.f32 0.0, %v600
        %602 = vmatmul.f32.gmra.mxu0 %v345
        %v603 = vpop.f32.mrf.mxu0
        %v604 = vadd.f32 0.0, %v603
        %605 = vmatmul.f32.gmra.mxu0 %v350
        %v606 = vpop.f32.mrf.mxu0
        %v607 = vadd.f32 0.0, %v606
        %608 = vmatmul.f32.gmra.mxu0 %v355
        %v609 = vpop.f32.mrf.mxu0
        %v610 = vadd.f32 0.0, %v609
        %611 = vmatmul.f32.gmra.mxu0 %v360
        %v612 = vpop.f32.mrf.mxu0
        %v613 = vadd.f32 0.0, %v612
        %614 = vdwg.mxu0
        %615 = vmatpush.msra.mxu0 %v509
        %616 = vmatpush.msra.mxu0 %v507
        %617 = vmatpush.msra.mxu0 %v505
        %618 = vmatpush.msra.mxu0 %v503
        %619 = vmatpush.msra.mxu0 %v501
        %620 = vmatpush.msra.mxu0 %v499
        %621 = vmatpush.msra.mxu0 %v497
        %622 = vmatpush.msra.mxu0 %v495
        %623 = vmatpush.msra.mxu0 %v493
        %624 = vmatpush.msra.mxu0 %v491
        %625 = vmatpush.msra.mxu0 %v489
        %626 = vmatpush.msra.mxu0 %v487
        %627 = vmatpush.msra.mxu0 %v485
        %628 = vmatpush.msra.mxu0 %v483
        %629 = vmatpush.msra.mxu0 %v481
        %630 = vmatpush.msra.mxu0 %v479
        %631 = vmatmul.f32.gmra.mxu0 %v338
        %v632 = vpop.f32.mrf.mxu0
        %v633 = vadd.f32 %v598, %v632
        %634 = vmatmul.f32.gmra.mxu0 %v342
        %v635 = vpop.f32.mrf.mxu0
        %v636 = vadd.f32 %v601, %v635
        %637 = vmatmul.f32.gmra.mxu0 %v348
        %v638 = vpop.f32.mrf.mxu0
        %v639 = vadd.f32 %v604, %v638
        %640 = vmatmul.f32.gmra.mxu0 %v352
        %v641 = vpop.f32.mrf.mxu0
        %v642 = vadd.f32 %v607, %v641
        %643 = vmatmul.f32.gmra.mxu0 %v358
        %v644 = vpop.f32.mrf.mxu0
        %v645 = vadd.f32 %v610, %v644
        %646 = vmatmul.f32.gmra.mxu0 %v362
        %v647 = vpop.f32.mrf.mxu0
        %v648 = vadd.f32 %v613, %v647
        %649 = vdwg.mxu0
        %650 = vmatpush.msra.mxu0 %v411
        %651 = vmatpush.msra.mxu0 %v409
        %652 = vmatpush.msra.mxu0 %v407
        %653 = vmatpush.msra.mxu0 %v405
        %654 = vmatpush.msra.mxu0 %v403
        %655 = vmatpush.msra.mxu0 %v401
        %656 = vmatpush.msra.mxu0 %v399
        %657 = vmatpush.msra.mxu0 %v397
        %658 = vmatpush.msra.mxu0 %v395
        %659 = vmatpush.msra.mxu0 %v393
        %660 = vmatpush.msra.mxu0 %v391
        %661 = vmatpush.msra.mxu0 %v389
        %662 = vmatpush.msra.mxu0 %v387
        %663 = vmatpush.msra.mxu0 %v385
        %664 = vmatpush.msra.mxu0 %v383
        %665 = vmatpush.msra.mxu0 %v381
        %666 = vmatmul.f32.gmra.mxu0 %v375
        %v667 = vpop.f32.mrf.mxu0
        %v668 = vadd.f32 %v563, %v667
        %669 = vmatmul.f32.gmra.mxu0 %v298
        %v670 = vpop.f32.mrf.mxu0
        %v671 = vadd.f32 %v566, %v670
        %672 = vmatmul.f32.gmra.mxu0 %v377
        %v673 = vpop.f32.mrf.mxu0
        %v674 = vadd.f32 %v569, %v673
        %675 = vmatmul.f32.gmra.mxu0 %v304
        %v676 = vpop.f32.mrf.mxu0
        %v677 = vadd.f32 %v572, %v676
        %678 = vmatmul.f32.gmra.mxu0 %v379
        %v679 = vpop.f32.mrf.mxu0
        %v680 = vadd.f32 %v575, %v679
        %681 = vmatmul.f32.gmra.mxu0 %v310
        %v682 = vpop.f32.mrf.mxu0
        %v683 = vadd.f32 %v578, %v682
        %684 = vdwg.mxu0
        %685 = vmatpush.msra.mxu0 %v443
        %686 = vmatpush.msra.mxu0 %v441
        %687 = vmatpush.msra.mxu0 %v439
        %688 = vmatpush.msra.mxu0 %v437
        %689 = vmatpush.msra.mxu0 %v435
        %690 = vmatpush.msra.mxu0 %v433
        %691 = vmatpush.msra.mxu0 %v431
        %692 = vmatpush.msra.mxu0 %v429
        %693 = vmatpush.msra.mxu0 %v427
        %694 = vmatpush.msra.mxu0 %v425
        %695 = vmatpush.msra.mxu0 %v423
        %696 = vmatpush.msra.mxu0 %v421
        %697 = vmatpush.msra.mxu0 %v419
        %698 = vmatpush.msra.mxu0 %v417
        %699 = vmatpush.msra.mxu0 %v415
        %700 = vmatpush.msra.mxu0 %v413
        %701 = vmatmul.f32.gmra.mxu0 %v376
        %v702 = vpop.f32.mrf.mxu0
        %v703 = vadd.f32 %v668, %v702
        %704 = vmatmul.f32.gmra.mxu0 %v299
        %v705 = vpop.f32.mrf.mxu0
        %v706 = vadd.f32 %v671, %v705
        %707 = vmatmul.f32.gmra.mxu0 %v378
        %v708 = vpop.f32.mrf.mxu0
        %v709 = vadd.f32 %v674, %v708
        %710 = vmatmul.f32.gmra.mxu0 %v305
        %v711 = vpop.f32.mrf.mxu0
        %v712 = vadd.f32 %v677, %v711
        %713 = vmatmul.f32.gmra.mxu0 %v380
        %v714 = vpop.f32.mrf.mxu0
        %v715 = vadd.f32 %v680, %v714
        %716 = vmatmul.f32.gmra.mxu0 %v311
        %v717 = vpop.f32.mrf.mxu0
        %v718 = vadd.f32 %v683, %v717
        %719 = vdwg.mxu0
        %720 = vmatpush.msra.mxu0 %v412
        %721 = vmatpush.msra.mxu0 %v410
        %722 = vmatpush.msra.mxu0 %v408
        %723 = vmatpush.msra.mxu0 %v406
        %724 = vmatpush.msra.mxu0 %v404
        %725 = vmatpush.msra.mxu0 %v402
        %726 = vmatpush.msra.mxu0 %v400
        %727 = vmatpush.msra.mxu0 %v398
        %728 = vmatpush.msra.mxu0 %v396
        %729 = vmatpush.msra.mxu0 %v394
        %730 = vmatpush.msra.mxu0 %v392
        %731 = vmatpush.msra.mxu0 %v390
        %732 = vmatpush.msra.mxu0 %v388
        %733 = vmatpush.msra.mxu0 %v386
        %734 = vmatpush.msra.mxu0 %v384
        %735 = vmatpush.msra.mxu0 %v382
        %736 = vmatmul.f32.gmra.mxu0 %v375
        %v737 = vpop.f32.mrf.mxu0
        %v738 = vadd.f32 %v633, %v737
        %739 = vmatmul.f32.gmra.mxu0 %v298
        %v740 = vpop.f32.mrf.mxu0
        %v741 = vadd.f32 %v636, %v740
        %742 = vmatmul.f32.gmra.mxu0 %v377
        %v743 = vpop.f32.mrf.mxu0
        %v744 = vadd.f32 %v639, %v743
        %745 = vmatmul.f32.gmra.mxu0 %v304
        %v746 = vpop.f32.mrf.mxu0
        %v747 = vadd.f32 %v642, %v746
        %748 = vmatmul.f32.gmra.mxu0 %v379
        %v749 = vpop.f32.mrf.mxu0
        %v750 = vadd.f32 %v645, %v749
        %751 = vmatmul.f32.gmra.mxu0 %v310
        %v752 = vpop.f32.mrf.mxu0
        %v753 = vadd.f32 %v648, %v752
        %754 = vdwg.mxu0
        %755 = vmatpush.msra.mxu0 %v444
        %756 = vmatpush.msra.mxu0 %v442
        %757 = vmatpush.msra.mxu0 %v440
        %758 = vmatpush.msra.mxu0 %v438
        %759 = vmatpush.msra.mxu0 %v436
        %760 = vmatpush.msra.mxu0 %v434
        %761 = vmatpush.msra.mxu0 %v432
        %762 = vmatpush.msra.mxu0 %v430
        %763 = vmatpush.msra.mxu0 %v428
        %764 = vmatpush.msra.mxu0 %v426
        %765 = vmatpush.msra.mxu0 %v424
        %766 = vmatpush.msra.mxu0 %v422
        %767 = vmatpush.msra.mxu0 %v420
        %768 = vmatpush.msra.mxu0 %v418
        %769 = vmatpush.msra.mxu0 %v416
        %770 = vmatpush.msra.mxu0 %v414
        %771 = vmatmul.f32.gmra.mxu0 %v376
        %v772 = vpop.f32.mrf.mxu0
        %v773 = vadd.f32 %v738, %v772
        %774 = vmatmul.f32.gmra.mxu0 %v299
        %v775 = vpop.f32.mrf.mxu0
        %v776 = vadd.f32 %v741, %v775
        %777 = vmatmul.f32.gmra.mxu0 %v378
        %v778 = vpop.f32.mrf.mxu0
        %v779 = vadd.f32 %v744, %v778
        %780 = vmatmul.f32.gmra.mxu0 %v305
        %v781 = vpop.f32.mrf.mxu0
        %v782 = vadd.f32 %v747, %v781
        %783 = vmatmul.f32.gmra.mxu0 %v380
        %v784 = vpop.f32.mrf.mxu0
        %v785 = vadd.f32 %v750, %v784
        %786 = vmatmul.f32.gmra.mxu0 %v311
        %v787 = vpop.f32.mrf.mxu0
        %v788 = vadd.f32 %v753, %v787
        %789 = vdwg.mxu0
        %v790 = vld [vmem:[%s251] sm:$0xfc]
        %v791 = vld [vmem:[%s251 + $0x8] sm:$0xfc]
        %v792 = vld [vmem:[%s251 + $0x20] sm:$0x3]
        %v793 = vld [vmem:[%s251 + $0x28] sm:$0x3]
        %v794 = vld [vmem:[%s251 + $0x30] sm:$0xfc]
        %v795 = vld [vmem:[%s251 + $0x38] sm:$0xfc]
        %v796 = vld [vmem:[%s251 + $0x50] sm:$0x3]
        %v797 = vld [vmem:[%s251 + $0x58] sm:$0x3]
        %v798 = vld [vmem:[%s251 + $0x60] sm:$0xfc]
        %v799 = vld [vmem:[%s251 + $0x68] sm:$0xfc]
        %v800 = vld [vmem:[%s251 + $0x80] sm:$0x3]
        %v801 = vld [vmem:[%s251 + $0x88] sm:$0x3]
        %vm814 = vcmask 1045504
        %v815 = vrot.slane %v790, 2
        %v816 = vrot.slane %v298, 2
        %v817 = vsel %vm814, %v815, %v816
        %v818 = vrot.slane %v791, 2
        %v819 = vrot.slane %v299, 2
        %v820 = vsel %vm814, %v818, %v819
        %v821 = vrot.slane %v792, 2
        %v822 = vsel %vm814, %v816, %v821
        %v823 = vrot.slane %v793, 2
        %v824 = vsel %vm814, %v819, %v823
        %v825 = vrot.slane %v794, 2
        %v826 = vrot.slane %v304, 2
        %v827 = vsel %vm814, %v825, %v826
        %v828 = vrot.slane %v795, 2
        %v829 = vrot.slane %v305, 2
        %v830 = vsel %vm814, %v828, %v829
        %v831 = vrot.slane %v796, 2
        %v832 = vsel %vm814, %v826, %v831
        %v833 = vrot.slane %v797, 2
        %v834 = vsel %vm814, %v829, %v833
        %v835 = vrot.slane %v798, 2
        %v836 = vrot.slane %v310, 2
        %v837 = vsel %vm814, %v835, %v836
        %v838 = vrot.slane %v799, 2
        %v839 = vrot.slane %v311, 2
        %v840 = vsel %vm814, %v838, %v839
        %v841 = vrot.slane %v800, 2
        %v842 = vsel %vm814, %v836, %v841
        %v843 = vrot.slane %v801, 2
        %v844 = vsel %vm814, %v839, %v843
        %s857 = scalar_lea.vmem [#allocation6], 1024
        %v858 = vld [vmem:[%s857] sm:$0xff]
        %v859 = vld [vmem:[%s857 + $0x8] sm:$0xff]
        %v860 = vld [vmem:[%s857 + $0x10] sm:$0xff]
        %v861 = vld [vmem:[%s857 + $0x18] sm:$0xff]
        %v862 = vld [vmem:[%s857 + $0x20] sm:$0xff]
        %v863 = vld [vmem:[%s857 + $0x28] sm:$0xff]
        %v864 = vld [vmem:[%s857 + $0x30] sm:$0xff]
        %v865 = vld [vmem:[%s857 + $0x38] sm:$0xff]
        %v866 = vld [vmem:[%s857 + $0x40] sm:$0xff]
        %v867 = vld [vmem:[%s857 + $0x48] sm:$0xff]
        %v868 = vld [vmem:[%s857 + $0x50] sm:$0xff]
        %v869 = vld [vmem:[%s857 + $0x58] sm:$0xff]
        %v870 = vld [vmem:[%s857 + $0x60] sm:$0xff]
        %v871 = vld [vmem:[%s857 + $0x68] sm:$0xff]
        %v872 = vld [vmem:[%s857 + $0x70] sm:$0xff]
        %v873 = vld [vmem:[%s857 + $0x78] sm:$0xff]
        %v874 = vld [vmem:[%s857 + $0x80] sm:$0xff]
        %v875 = vld [vmem:[%s857 + $0x88] sm:$0xff]
        %v876 = vld [vmem:[%s857 + $0x90] sm:$0xff]
        %v877 = vld [vmem:[%s857 + $0x98] sm:$0xff]
        %v878 = vld [vmem:[%s857 + $0xa0] sm:$0xff]
        %v879 = vld [vmem:[%s857 + $0xa8] sm:$0xff]
        %v880 = vld [vmem:[%s857 + $0xb0] sm:$0xff]
        %v881 = vld [vmem:[%s857 + $0xb8] sm:$0xff]
        %v882 = vld [vmem:[%s857 + $0xc0] sm:$0xff]
        %v883 = vld [vmem:[%s857 + $0xc8] sm:$0xff]
        %v884 = vld [vmem:[%s857 + $0xd0] sm:$0xff]
        %v885 = vld [vmem:[%s857 + $0xd8] sm:$0xff]
        %v886 = vld [vmem:[%s857 + $0xe0] sm:$0xff]
        %v887 = vld [vmem:[%s857 + $0xe8] sm:$0xff]
        %v888 = vld [vmem:[%s857 + $0xf0] sm:$0xff]
        %v889 = vld [vmem:[%s857 + $0xf8] sm:$0xff]
        %v890 = vld [vmem:[%s857 + $0x100] sm:$0xff]
        %v891 = vld [vmem:[%s857 + $0x108] sm:$0xff]
        %v892 = vld [vmem:[%s857 + $0x110] sm:$0xff]
        %v893 = vld [vmem:[%s857 + $0x118] sm:$0xff]
        %v894 = vld [vmem:[%s857 + $0x120] sm:$0xff]
        %v895 = vld [vmem:[%s857 + $0x128] sm:$0xff]
        %v896 = vld [vmem:[%s857 + $0x130] sm:$0xff]
        %v897 = vld [vmem:[%s857 + $0x138] sm:$0xff]
        %v898 = vld [vmem:[%s857 + $0x140] sm:$0xff]
        %v899 = vld [vmem:[%s857 + $0x148] sm:$0xff]
        %v900 = vld [vmem:[%s857 + $0x150] sm:$0xff]
        %v901 = vld [vmem:[%s857 + $0x158] sm:$0xff]
        %v902 = vld [vmem:[%s857 + $0x160] sm:$0xff]
        %v903 = vld [vmem:[%s857 + $0x168] sm:$0xff]
        %v904 = vld [vmem:[%s857 + $0x170] sm:$0xff]
        %v905 = vld [vmem:[%s857 + $0x178] sm:$0xff]
        %v906 = vld [vmem:[%s857 + $0x180] sm:$0xff]
        %v907 = vld [vmem:[%s857 + $0x188] sm:$0xff]
        %v908 = vld [vmem:[%s857 + $0x190] sm:$0xff]
        %v909 = vld [vmem:[%s857 + $0x198] sm:$0xff]
        %v910 = vld [vmem:[%s857 + $0x1a0] sm:$0xff]
        %v911 = vld [vmem:[%s857 + $0x1a8] sm:$0xff]
        %v912 = vld [vmem:[%s857 + $0x1b0] sm:$0xff]
        %v913 = vld [vmem:[%s857 + $0x1b8] sm:$0xff]
        %v914 = vld [vmem:[%s857 + $0x1c0] sm:$0xff]
        %v915 = vld [vmem:[%s857 + $0x1c8] sm:$0xff]
        %v916 = vld [vmem:[%s857 + $0x1d0] sm:$0xff]
        %v917 = vld [vmem:[%s857 + $0x1d8] sm:$0xff]
        %v918 = vld [vmem:[%s857 + $0x1e0] sm:$0xff]
        %v919 = vld [vmem:[%s857 + $0x1e8] sm:$0xff]
        %v920 = vld [vmem:[%s857 + $0x1f0] sm:$0xff]
        %v921 = vld [vmem:[%s857 + $0x1f8] sm:$0xff]
        %922 = vmatpush.msra.mxu0 %v888
        %923 = vmatpush.msra.mxu0 %v886
        %924 = vmatpush.msra.mxu0 %v884
        %925 = vmatpush.msra.mxu0 %v882
        %926 = vmatpush.msra.mxu0 %v880
        %927 = vmatpush.msra.mxu0 %v878
        %928 = vmatpush.msra.mxu0 %v876
        %929 = vmatpush.msra.mxu0 %v874
        %930 = vmatpush.msra.mxu0 %v872
        %931 = vmatpush.msra.mxu0 %v870
        %932 = vmatpush.msra.mxu0 %v868
        %933 = vmatpush.msra.mxu0 %v866
        %934 = vmatpush.msra.mxu0 %v864
        %935 = vmatpush.msra.mxu0 %v862
        %936 = vmatpush.msra.mxu0 %v860
        %937 = vmatpush.msra.mxu0 %v858
        %938 = vmatmul.f32.gmra.mxu0 %v817
        %v939 = vpop.f32.mrf.mxu0
        %v940 = vadd.f32 0.0, %v939
        %941 = vmatmul.f32.gmra.mxu0 %v822
        %v942 = vpop.f32.mrf.mxu0
        %v943 = vadd.f32 0.0, %v942
        %944 = vmatmul.f32.gmra.mxu0 %v827
        %v945 = vpop.f32.mrf.mxu0
        %v946 = vadd.f32 0.0, %v945
        %947 = vmatmul.f32.gmra.mxu0 %v832
        %v948 = vpop.f32.mrf.mxu0
        %v949 = vadd.f32 0.0, %v948
        %950 = vmatmul.f32.gmra.mxu0 %v837
        %v951 = vpop.f32.mrf.mxu0
        %v952 = vadd.f32 0.0, %v951
        %953 = vmatmul.f32.gmra.mxu0 %v842
        %v954 = vpop.f32.mrf.mxu0
        %v955 = vadd.f32 0.0, %v954
        %956 = vdwg.mxu0
        %957 = vmatpush.msra.mxu0 %v920
        %958 = vmatpush.msra.mxu0 %v918
        %959 = vmatpush.msra.mxu0 %v916
        %960 = vmatpush.msra.mxu0 %v914
        %961 = vmatpush.msra.mxu0 %v912
        %962 = vmatpush.msra.mxu0 %v910
        %963 = vmatpush.msra.mxu0 %v908
        %964 = vmatpush.msra.mxu0 %v906
        %965 = vmatpush.msra.mxu0 %v904
        %966 = vmatpush.msra.mxu0 %v902
        %967 = vmatpush.msra.mxu0 %v900
        %968 = vmatpush.msra.mxu0 %v898
        %969 = vmatpush.msra.mxu0 %v896
        %970 = vmatpush.msra.mxu0 %v894
        %971 = vmatpush.msra.mxu0 %v892
        %972 = vmatpush.msra.mxu0 %v890
        %973 = vmatmul.f32.gmra.mxu0 %v820
        %v974 = vpop.f32.mrf.mxu0
        %v975 = vadd.f32 %v940, %v974
        %976 = vmatmul.f32.gmra.mxu0 %v824
        %v977 = vpop.f32.mrf.mxu0
        %v978 = vadd.f32 %v943, %v977
        %979 = vmatmul.f32.gmra.mxu0 %v830
        %v980 = vpop.f32.mrf.mxu0
        %v981 = vadd.f32 %v946, %v980
        %982 = vmatmul.f32.gmra.mxu0 %v834
        %v983 = vpop.f32.mrf.mxu0
        %v984 = vadd.f32 %v949, %v983
        %985 = vmatmul.f32.gmra.mxu0 %v840
        %v986 = vpop.f32.mrf.mxu0
        %v987 = vadd.f32 %v952, %v986
        %988 = vmatmul.f32.gmra.mxu0 %v844
        %v989 = vpop.f32.mrf.mxu0
        %v990 = vadd.f32 %v955, %v989
        %991 = vdwg.mxu0
        %992 = vmatpush.msra.mxu0 %v889
        %993 = vmatpush.msra.mxu0 %v887
        %994 = vmatpush.msra.mxu0 %v885
        %995 = vmatpush.msra.mxu0 %v883
        %996 = vmatpush.msra.mxu0 %v881
        %997 = vmatpush.msra.mxu0 %v879
        %998 = vmatpush.msra.mxu0 %v877
        %999 = vmatpush.msra.mxu0 %v875
        %1000 = vmatpush.msra.mxu0 %v873
        %1001 = vmatpush.msra.mxu0 %v871
        %1002 = vmatpush.msra.mxu0 %v869
        %1003 = vmatpush.msra.mxu0 %v867
        %1004 = vmatpush.msra.mxu0 %v865
        %1005 = vmatpush.msra.mxu0 %v863
        %1006 = vmatpush.msra.mxu0 %v861
        %1007 = vmatpush.msra.mxu0 %v859
        %1008 = vmatmul.f32.gmra.mxu0 %v817
        %v1009 = vpop.f32.mrf.mxu0
        %v1010 = vadd.f32 0.0, %v1009
        %1011 = vmatmul.f32.gmra.mxu0 %v822
        %v1012 = vpop.f32.mrf.mxu0
        %v1013 = vadd.f32 0.0, %v1012
        %1014 = vmatmul.f32.gmra.mxu0 %v827
        %v1015 = vpop.f32.mrf.mxu0
        %v1016 = vadd.f32 0.0, %v1015
        %1017 = vmatmul.f32.gmra.mxu0 %v832
        %v1018 = vpop.f32.mrf.mxu0
        %v1019 = vadd.f32 0.0, %v1018
        %1020 = vmatmul.f32.gmra.mxu0 %v837
        %v1021 = vpop.f32.mrf.mxu0
        %v1022 = vadd.f32 0.0, %v1021
        %1023 = vmatmul.f32.gmra.mxu0 %v842
        %v1024 = vpop.f32.mrf.mxu0
        %v1025 = vadd.f32 0.0, %v1024
        %1026 = vdwg.mxu0
        %1027 = vmatpush.msra.mxu0 %v921
        %1028 = vmatpush.msra.mxu0 %v919
        %1029 = vmatpush.msra.mxu0 %v917
        %1030 = vmatpush.msra.mxu0 %v915
        %1031 = vmatpush.msra.mxu0 %v913
        %1032 = vmatpush.msra.mxu0 %v911
        %1033 = vmatpush.msra.mxu0 %v909
        %1034 = vmatpush.msra.mxu0 %v907
        %1035 = vmatpush.msra.mxu0 %v905
        %1036 = vmatpush.msra.mxu0 %v903
        %1037 = vmatpush.msra.mxu0 %v901
        %1038 = vmatpush.msra.mxu0 %v899
        %1039 = vmatpush.msra.mxu0 %v897
        %1040 = vmatpush.msra.mxu0 %v895
        %1041 = vmatpush.msra.mxu0 %v893
        %1042 = vmatpush.msra.mxu0 %v891
        %1043 = vmatmul.f32.gmra.mxu0 %v820
        %v1044 = vpop.f32.mrf.mxu0
        %v1045 = vadd.f32 %v1010, %v1044
        %1046 = vmatmul.f32.gmra.mxu0 %v824
        %v1047 = vpop.f32.mrf.mxu0
        %v1048 = vadd.f32 %v1013, %v1047
        %1049 = vmatmul.f32.gmra.mxu0 %v830
        %v1050 = vpop.f32.mrf.mxu0
        %v1051 = vadd.f32 %v1016, %v1050
        %1052 = vmatmul.f32.gmra.mxu0 %v834
        %v1053 = vpop.f32.mrf.mxu0
        %v1054 = vadd.f32 %v1019, %v1053
        %1055 = vmatmul.f32.gmra.mxu0 %v840
        %v1056 = vpop.f32.mrf.mxu0
        %v1057 = vadd.f32 %v1022, %v1056
        %1058 = vmatmul.f32.gmra.mxu0 %v844
        %v1059 = vpop.f32.mrf.mxu0
        %v1060 = vadd.f32 %v1025, %v1059
        %1061 = vdwg.mxu0
        %v1062 = vadd.f32 %v703, %v975
        %v1063 = vadd.f32 %v773, %v1045
        %v1064 = vadd.f32 %v706, %v978
        %v1065 = vadd.f32 %v776, %v1048
        %v1066 = vadd.f32 %v709, %v981
        %v1067 = vadd.f32 %v779, %v1051
        %v1068 = vadd.f32 %v712, %v984
        %v1069 = vadd.f32 %v782, %v1054
        %v1070 = vadd.f32 %v715, %v987
        %v1071 = vadd.f32 %v785, %v1057
        %v1072 = vadd.f32 %v718, %v990
        %v1073 = vadd.f32 %v788, %v1060
        %v1074 = vld [vmem:[#allocation8] sm:$0x3]
        %v1076 = vperm.slane %v1074, 0
        %v1077 = vperm.slane %v1074, 1
        %v1080 = vadd.f32 %v1062, %v1076
        %v1081 = vadd.f32 %v1063, %v1077
        %v1082 = vadd.f32 %v1064, %v1076
        %v1083 = vadd.f32 %v1065, %v1077
        %v1084 = vadd.f32 %v1066, %v1076
        %v1085 = vadd.f32 %v1067, %v1077
        %v1086 = vadd.f32 %v1068, %v1076
        %v1087 = vadd.f32 %v1069, %v1077
        %v1088 = vadd.f32 %v1070, %v1076
        %v1089 = vadd.f32 %v1071, %v1077
        %v1090 = vadd.f32 %v1072, %v1076
        %v1091 = vadd.f32 %v1073, %v1077
        %v1092 = vmul.f32 %v1080, 0.5
        %v1093 = vmul.f32 %v1081, 0.5
        %v1094 = vmul.f32 %v1082, 0.5
        %v1095 = vmul.f32 %v1083, 0.5
        %v1096 = vmul.f32 %v1084, 0.5
        %v1097 = vmul.f32 %v1085, 0.5
        %v1098 = vmul.f32 %v1086, 0.5
        %v1099 = vmul.f32 %v1087, 0.5
        %v1100 = vmul.f32 %v1088, 0.5
        %v1101 = vmul.f32 %v1089, 0.5
        %v1102 = vmul.f32 %v1090, 0.5
        %v1103 = vmul.f32 %v1091, 0.5
        %v1104 = vmul.f32 %v1080, 0.70710677
        %v1105 = vmul.f32 %v1081, 0.70710677
        %v1106 = vmul.f32 %v1082, 0.70710677
        %v1107 = vmul.f32 %v1083, 0.70710677
        %v1108 = vmul.f32 %v1084, 0.70710677
        %v1109 = vmul.f32 %v1085, 0.70710677
        %v1110 = vmul.f32 %v1086, 0.70710677
        %v1111 = vmul.f32 %v1087, 0.70710677
        %v1112 = vmul.f32 %v1088, 0.70710677
        %v1113 = vmul.f32 %v1089, 0.70710677
        %v1114 = vmul.f32 %v1090, 0.70710677
        %v1115 = vmul.f32 %v1091, 0.70710677
        %v1116 = vand.u32 2147483647, %v1104
        %v1117 = vand.u32 2147483647, %v1105
        %v1118 = vand.u32 2147483647, %v1106
        %v1119 = vand.u32 2147483647, %v1107
        %v1120 = vand.u32 2147483647, %v1108
        %v1121 = vand.u32 2147483647, %v1109
        %v1122 = vand.u32 2147483647, %v1110
        %v1123 = vand.u32 2147483647, %v1111
        %v1124 = vand.u32 2147483647, %v1112
        %v1125 = vand.u32 2147483647, %v1113
        %v1126 = vand.u32 2147483647, %v1114
        %v1127 = vand.u32 2147483647, %v1115
        %v1128 = vmul.f32 %v1116, 0.3275911
        %v1129 = vmul.f32 %v1117, 0.3275911
        %v1130 = vmul.f32 %v1118, 0.3275911
        %v1131 = vmul.f32 %v1119, 0.3275911
        %v1132 = vmul.f32 %v1120, 0.3275911
        %v1133 = vmul.f32 %v1121, 0.3275911
        %v1134 = vmul.f32 %v1122, 0.3275911
        %v1135 = vmul.f32 %v1123, 0.3275911
        %v1136 = vmul.f32 %v1124, 0.3275911
        %v1137 = vmul.f32 %v1125, 0.3275911
        %v1138 = vmul.f32 %v1126, 0.3275911
        %v1139 = vmul.f32 %v1127, 0.3275911
        %v1140 = vadd.f32 %v1128, 1.0
        %v1141 = vadd.f32 %v1129, 1.0
        %v1142 = vadd.f32 %v1130, 1.0
        %v1143 = vadd.f32 %v1131, 1.0
        %v1144 = vadd.f32 %v1132, 1.0
        %v1145 = vadd.f32 %v1133, 1.0
        %v1146 = vadd.f32 %v1134, 1.0
        %v1147 = vadd.f32 %v1135, 1.0
        %v1148 = vadd.f32 %v1136, 1.0
        %v1149 = vadd.f32 %v1137, 1.0
        %v1150 = vadd.f32 %v1138, 1.0
        %v1151 = vadd.f32 %v1139, 1.0
        %v1152 = vrcp.pop %v1140
        %v1153 = vmul.f32 %v1140, %v1152
        %v1154 = vsub.f32 1.0, %v1153
        %v1155 = vmul.f32 %v1152, %v1154
        %v1156 = vadd.f32 %v1152, %v1155
        %vm1157 = vweird.f32 %v1140
        %vm1158 = vweird.f32 %v1152
        %vm1159 = vmor %vm1157, %vm1158
        %v1160 = vsel %vm1159, %v1152, %v1156
        %v1161 = vand.u32 2147483647, %v1140
        %vm1162 = vcmp.eq.f32.partialorder %v1161, 8.507059e+37
        %v1163 = vand.u32 %v1140, 2147483648
        %v1164 = vor.u32 1.1754944e-38, %v1163
        %v1165 = vsel %vm1162, %v1164, %v1160
        %v1166 = vmul.f32 1.0, %v1165
        %v1167 = vrcp.pop %v1141
        %v1168 = vmul.f32 %v1141, %v1167
        %v1169 = vsub.f32 1.0, %v1168
        %v1170 = vmul.f32 %v1167, %v1169
        %v1171 = vadd.f32 %v1167, %v1170
        %vm1172 = vweird.f32 %v1141
        %vm1173 = vweird.f32 %v1167
        %vm1174 = vmor %vm1172, %vm1173
        %v1175 = vsel %vm1174, %v1167, %v1171
        %v1176 = vand.u32 2147483647, %v1141
        %vm1177 = vcmp.eq.f32.partialorder %v1176, 8.507059e+37
        %v1178 = vand.u32 %v1141, 2147483648
        %v1179 = vor.u32 1.1754944e-38, %v1178
        %v1180 = vsel %vm1177, %v1179, %v1175
        %v1181 = vmul.f32 1.0, %v1180
        %v1182 = vrcp.pop %v1142
        %v1183 = vmul.f32 %v1142, %v1182
        %v1184 = vsub.f32 1.0, %v1183
        %v1185 = vmul.f32 %v1182, %v1184
        %v1186 = vadd.f32 %v1182, %v1185
        %vm1187 = vweird.f32 %v1142
        %vm1188 = vweird.f32 %v1182
        %vm1189 = vmor %vm1187, %vm1188
        %v1190 = vsel %vm1189, %v1182, %v1186
        %v1191 = vand.u32 2147483647, %v1142
        %vm1192 = vcmp.eq.f32.partialorder %v1191, 8.507059e+37
        %v1193 = vand.u32 %v1142, 2147483648
        %v1194 = vor.u32 1.1754944e-38, %v1193
        %v1195 = vsel %vm1192, %v1194, %v1190
        %v1196 = vmul.f32 1.0, %v1195
        %v1197 = vrcp.pop %v1143
        %v1198 = vmul.f32 %v1143, %v1197
        %v1199 = vsub.f32 1.0, %v1198
        %v1200 = vmul.f32 %v1197, %v1199
        %v1201 = vadd.f32 %v1197, %v1200
        %vm1202 = vweird.f32 %v1143
        %vm1203 = vweird.f32 %v1197
        %vm1204 = vmor %vm1202, %vm1203
        %v1205 = vsel %vm1204, %v1197, %v1201
        %v1206 = vand.u32 2147483647, %v1143
        %vm1207 = vcmp.eq.f32.partialorder %v1206, 8.507059e+37
        %v1208 = vand.u32 %v1143, 2147483648
        %v1209 = vor.u32 1.1754944e-38, %v1208
        %v1210 = vsel %vm1207, %v1209, %v1205
        %v1211 = vmul.f32 1.0, %v1210
        %v1212 = vrcp.pop %v1144
        %v1213 = vmul.f32 %v1144, %v1212
        %v1214 = vsub.f32 1.0, %v1213
        %v1215 = vmul.f32 %v1212, %v1214
        %v1216 = vadd.f32 %v1212, %v1215
        %vm1217 = vweird.f32 %v1144
        %vm1218 = vweird.f32 %v1212
        %vm1219 = vmor %vm1217, %vm1218
        %v1220 = vsel %vm1219, %v1212, %v1216
        %v1221 = vand.u32 2147483647, %v1144
        %vm1222 = vcmp.eq.f32.partialorder %v1221, 8.507059e+37
        %v1223 = vand.u32 %v1144, 2147483648
        %v1224 = vor.u32 1.1754944e-38, %v1223
        %v1225 = vsel %vm1222, %v1224, %v1220
        %v1226 = vmul.f32 1.0, %v1225
        %v1227 = vrcp.pop %v1145
        %v1228 = vmul.f32 %v1145, %v1227
        %v1229 = vsub.f32 1.0, %v1228
        %v1230 = vmul.f32 %v1227, %v1229
        %v1231 = vadd.f32 %v1227, %v1230
        %vm1232 = vweird.f32 %v1145
        %vm1233 = vweird.f32 %v1227
        %vm1234 = vmor %vm1232, %vm1233
        %v1235 = vsel %vm1234, %v1227, %v1231
        %v1236 = vand.u32 2147483647, %v1145
        %vm1237 = vcmp.eq.f32.partialorder %v1236, 8.507059e+37
        %v1238 = vand.u32 %v1145, 2147483648
        %v1239 = vor.u32 1.1754944e-38, %v1238
        %v1240 = vsel %vm1237, %v1239, %v1235
        %v1241 = vmul.f32 1.0, %v1240
        %v1242 = vrcp.pop %v1146
        %v1243 = vmul.f32 %v1146, %v1242
        %v1244 = vsub.f32 1.0, %v1243
        %v1245 = vmul.f32 %v1242, %v1244
        %v1246 = vadd.f32 %v1242, %v1245
        %vm1247 = vweird.f32 %v1146
        %vm1248 = vweird.f32 %v1242
        %vm1249 = vmor %vm1247, %vm1248
        %v1250 = vsel %vm1249, %v1242, %v1246
        %v1251 = vand.u32 2147483647, %v1146
        %vm1252 = vcmp.eq.f32.partialorder %v1251, 8.507059e+37
        %v1253 = vand.u32 %v1146, 2147483648
        %v1254 = vor.u32 1.1754944e-38, %v1253
        %v1255 = vsel %vm1252, %v1254, %v1250
        %v1256 = vmul.f32 1.0, %v1255
        %v1257 = vrcp.pop %v1147
        %v1258 = vmul.f32 %v1147, %v1257
        %v1259 = vsub.f32 1.0, %v1258
        %v1260 = vmul.f32 %v1257, %v1259
        %v1261 = vadd.f32 %v1257, %v1260
        %vm1262 = vweird.f32 %v1147
        %vm1263 = vweird.f32 %v1257
        %vm1264 = vmor %vm1262, %vm1263
        %v1265 = vsel %vm1264, %v1257, %v1261
        %v1266 = vand.u32 2147483647, %v1147
        %vm1267 = vcmp.eq.f32.partialorder %v1266, 8.507059e+37
        %v1268 = vand.u32 %v1147, 2147483648
        %v1269 = vor.u32 1.1754944e-38, %v1268
        %v1270 = vsel %vm1267, %v1269, %v1265
        %v1271 = vmul.f32 1.0, %v1270
        %v1272 = vrcp.pop %v1148
        %v1273 = vmul.f32 %v1148, %v1272
        %v1274 = vsub.f32 1.0, %v1273
        %v1275 = vmul.f32 %v1272, %v1274
        %v1276 = vadd.f32 %v1272, %v1275
        %vm1277 = vweird.f32 %v1148
        %vm1278 = vweird.f32 %v1272
        %vm1279 = vmor %vm1277, %vm1278
        %v1280 = vsel %vm1279, %v1272, %v1276
        %v1281 = vand.u32 2147483647, %v1148
        %vm1282 = vcmp.eq.f32.partialorder %v1281, 8.507059e+37
        %v1283 = vand.u32 %v1148, 2147483648
        %v1284 = vor.u32 1.1754944e-38, %v1283
        %v1285 = vsel %vm1282, %v1284, %v1280
        %v1286 = vmul.f32 1.0, %v1285
        %v1287 = vrcp.pop %v1149
        %v1288 = vmul.f32 %v1149, %v1287
        %v1289 = vsub.f32 1.0, %v1288
        %v1290 = vmul.f32 %v1287, %v1289
        %v1291 = vadd.f32 %v1287, %v1290
        %vm1292 = vweird.f32 %v1149
        %vm1293 = vweird.f32 %v1287
        %vm1294 = vmor %vm1292, %vm1293
        %v1295 = vsel %vm1294, %v1287, %v1291
        %v1296 = vand.u32 2147483647, %v1149
        %vm1297 = vcmp.eq.f32.partialorder %v1296, 8.507059e+37
        %v1298 = vand.u32 %v1149, 2147483648
        %v1299 = vor.u32 1.1754944e-38, %v1298
        %v1300 = vsel %vm1297, %v1299, %v1295
        %v1301 = vmul.f32 1.0, %v1300
        %v1302 = vrcp.pop %v1150
        %v1303 = vmul.f32 %v1150, %v1302
        %v1304 = vsub.f32 1.0, %v1303
        %v1305 = vmul.f32 %v1302, %v1304
        %v1306 = vadd.f32 %v1302, %v1305
        %vm1307 = vweird.f32 %v1150
        %vm1308 = vweird.f32 %v1302
        %vm1309 = vmor %vm1307, %vm1308
        %v1310 = vsel %vm1309, %v1302, %v1306
        %v1311 = vand.u32 2147483647, %v1150
        %vm1312 = vcmp.eq.f32.partialorder %v1311, 8.507059e+37
        %v1313 = vand.u32 %v1150, 2147483648
        %v1314 = vor.u32 1.1754944e-38, %v1313
        %v1315 = vsel %vm1312, %v1314, %v1310
        %v1316 = vmul.f32 1.0, %v1315
        %v1317 = vrcp.pop %v1151
        %v1318 = vmul.f32 %v1151, %v1317
        %v1319 = vsub.f32 1.0, %v1318
        %v1320 = vmul.f32 %v1317, %v1319
        %v1321 = vadd.f32 %v1317, %v1320
        %vm1322 = vweird.f32 %v1151
        %vm1323 = vweird.f32 %v1317
        %vm1324 = vmor %vm1322, %vm1323
        %v1325 = vsel %vm1324, %v1317, %v1321
        %v1326 = vand.u32 2147483647, %v1151
        %vm1327 = vcmp.eq.f32.partialorder %v1326, 8.507059e+37
        %v1328 = vand.u32 %v1151, 2147483648
        %v1329 = vor.u32 1.1754944e-38, %v1328
        %v1330 = vsel %vm1327, %v1329, %v1325
        %v1331 = vmul.f32 1.0, %v1330
        %v1332 = vmul.f32 %v1166, 1.0614054
        %v1333 = vmul.f32 %v1181, 1.0614054
        %v1334 = vmul.f32 %v1196, 1.0614054
        %v1335 = vmul.f32 %v1211, 1.0614054
        %v1336 = vmul.f32 %v1226, 1.0614054
        %v1337 = vmul.f32 %v1241, 1.0614054
        %v1338 = vmul.f32 %v1256, 1.0614054
        %v1339 = vmul.f32 %v1271, 1.0614054
        %v1340 = vmul.f32 %v1286, 1.0614054
        %v1341 = vmul.f32 %v1301, 1.0614054
        %v1342 = vmul.f32 %v1316, 1.0614054
        %v1343 = vmul.f32 %v1331, 1.0614054
        %v1344 = vadd.f32 %v1332, -1.4531521
        %v1345 = vadd.f32 %v1333, -1.4531521
        %v1346 = vadd.f32 %v1334, -1.4531521
        %v1347 = vadd.f32 %v1335, -1.4531521
        %v1348 = vadd.f32 %v1336, -1.4531521
        %v1349 = vadd.f32 %v1337, -1.4531521
        %v1350 = vadd.f32 %v1338, -1.4531521
        %v1351 = vadd.f32 %v1339, -1.4531521
        %v1352 = vadd.f32 %v1340, -1.4531521
        %v1353 = vadd.f32 %v1341, -1.4531521
        %v1354 = vadd.f32 %v1342, -1.4531521
        %v1355 = vadd.f32 %v1343, -1.4531521
        %v1356 = vmul.f32 %v1344, %v1166
        %v1357 = vmul.f32 %v1345, %v1181
        %v1358 = vmul.f32 %v1346, %v1196
        %v1359 = vmul.f32 %v1347, %v1211
        %v1360 = vmul.f32 %v1348, %v1226
        %v1361 = vmul.f32 %v1349, %v1241
        %v1362 = vmul.f32 %v1350, %v1256
        %v1363 = vmul.f32 %v1351, %v1271
        %v1364 = vmul.f32 %v1352, %v1286
        %v1365 = vmul.f32 %v1353, %v1301
        %v1366 = vmul.f32 %v1354, %v1316
        %v1367 = vmul.f32 %v1355, %v1331
        %v1368 = vadd.f32 %v1356, 1.4214138
        %v1369 = vadd.f32 %v1357, 1.4214138
        %v1370 = vadd.f32 %v1358, 1.4214138
        %v1371 = vadd.f32 %v1359, 1.4214138
        %v1372 = vadd.f32 %v1360, 1.4214138
        %v1373 = vadd.f32 %v1361, 1.4214138
        %v1374 = vadd.f32 %v1362, 1.4214138
        %v1375 = vadd.f32 %v1363, 1.4214138
        %v1376 = vadd.f32 %v1364, 1.4214138
        %v1377 = vadd.f32 %v1365, 1.4214138
        %v1378 = vadd.f32 %v1366, 1.4214138
        %v1379 = vadd.f32 %v1367, 1.4214138
        %v1380 = vmul.f32 %v1368, %v1166
        %v1381 = vmul.f32 %v1369, %v1181
        %v1382 = vmul.f32 %v1370, %v1196
        %v1383 = vmul.f32 %v1371, %v1211
        %v1384 = vmul.f32 %v1372, %v1226
        %v1385 = vmul.f32 %v1373, %v1241
        %v1386 = vmul.f32 %v1374, %v1256
        %v1387 = vmul.f32 %v1375, %v1271
        %v1388 = vmul.f32 %v1376, %v1286
        %v1389 = vmul.f32 %v1377, %v1301
        %v1390 = vmul.f32 %v1378, %v1316
        %v1391 = vmul.f32 %v1379, %v1331
        %v1392 = vadd.f32 %v1380, -0.28449672
        %v1393 = vadd.f32 %v1381, -0.28449672
        %v1394 = vadd.f32 %v1382, -0.28449672
        %v1395 = vadd.f32 %v1383, -0.28449672
        %v1396 = vadd.f32 %v1384, -0.28449672
        %v1397 = vadd.f32 %v1385, -0.28449672
        %v1398 = vadd.f32 %v1386, -0.28449672
        %v1399 = vadd.f32 %v1387, -0.28449672
        %v1400 = vadd.f32 %v1388, -0.28449672
        %v1401 = vadd.f32 %v1389, -0.28449672
        %v1402 = vadd.f32 %v1390, -0.28449672
        %v1403 = vadd.f32 %v1391, -0.28449672
        %v1404 = vmul.f32 %v1392, %v1166
        %v1405 = vmul.f32 %v1393, %v1181
        %v1406 = vmul.f32 %v1394, %v1196
        %v1407 = vmul.f32 %v1395, %v1211
        %v1408 = vmul.f32 %v1396, %v1226
        %v1409 = vmul.f32 %v1397, %v1241
        %v1410 = vmul.f32 %v1398, %v1256
        %v1411 = vmul.f32 %v1399, %v1271
        %v1412 = vmul.f32 %v1400, %v1286
        %v1413 = vmul.f32 %v1401, %v1301
        %v1414 = vmul.f32 %v1402, %v1316
        %v1415 = vmul.f32 %v1403, %v1331
        %v1416 = vadd.f32 %v1404, 0.2548296
        %v1417 = vadd.f32 %v1405, 0.2548296
        %v1418 = vadd.f32 %v1406, 0.2548296
        %v1419 = vadd.f32 %v1407, 0.2548296
        %v1420 = vadd.f32 %v1408, 0.2548296
        %v1421 = vadd.f32 %v1409, 0.2548296
        %v1422 = vadd.f32 %v1410, 0.2548296
        %v1423 = vadd.f32 %v1411, 0.2548296
        %v1424 = vadd.f32 %v1412, 0.2548296
        %v1425 = vadd.f32 %v1413, 0.2548296
        %v1426 = vadd.f32 %v1414, 0.2548296
        %v1427 = vadd.f32 %v1415, 0.2548296
        %v1428 = vmul.f32 %v1416, %v1166
        %v1429 = vmul.f32 %v1417, %v1181
        %v1430 = vmul.f32 %v1418, %v1196
        %v1431 = vmul.f32 %v1419, %v1211
        %v1432 = vmul.f32 %v1420, %v1226
        %v1433 = vmul.f32 %v1421, %v1241
        %v1434 = vmul.f32 %v1422, %v1256
        %v1435 = vmul.f32 %v1423, %v1271
        %v1436 = vmul.f32 %v1424, %v1286
        %v1437 = vmul.f32 %v1425, %v1301
        %v1438 = vmul.f32 %v1426, %v1316
        %v1439 = vmul.f32 %v1427, %v1331
        %v1440 = vmul.f32 %v1116, %v1116
        %v1441 = vmul.f32 %v1117, %v1117
        %v1442 = vmul.f32 %v1118, %v1118
        %v1443 = vmul.f32 %v1119, %v1119
        %v1444 = vmul.f32 %v1120, %v1120
        %v1445 = vmul.f32 %v1121, %v1121
        %v1446 = vmul.f32 %v1122, %v1122
        %v1447 = vmul.f32 %v1123, %v1123
        %v1448 = vmul.f32 %v1124, %v1124
        %v1449 = vmul.f32 %v1125, %v1125
        %v1450 = vmul.f32 %v1126, %v1126
        %v1451 = vmul.f32 %v1127, %v1127
        %v1452 = vsub.f32 0.0, %v1440
        %v1453 = vsub.f32 0.0, %v1441
        %v1454 = vsub.f32 0.0, %v1442
        %v1455 = vsub.f32 0.0, %v1443
        %v1456 = vsub.f32 0.0, %v1444
        %v1457 = vsub.f32 0.0, %v1445
        %v1458 = vsub.f32 0.0, %v1446
        %v1459 = vsub.f32 0.0, %v1447
        %v1460 = vsub.f32 0.0, %v1448
        %v1461 = vsub.f32 0.0, %v1449
        %v1462 = vsub.f32 0.0, %v1450
        %v1463 = vsub.f32 0.0, %v1451
        %v1464 = vmul.f32 %v1452, 1.442695
        %v1465 = vpow.pop %v1464
        %v1466 = vmul.f32 %v1453, 1.442695
        %v1467 = vpow.pop %v1466
        %v1468 = vmul.f32 %v1454, 1.442695
        %v1469 = vpow.pop %v1468
        %v1470 = vmul.f32 %v1455, 1.442695
        %v1471 = vpow.pop %v1470
        %v1472 = vmul.f32 %v1456, 1.442695
        %v1473 = vpow.pop %v1472
        %v1474 = vmul.f32 %v1457, 1.442695
        %v1475 = vpow.pop %v1474
        %v1476 = vmul.f32 %v1458, 1.442695
        %v1477 = vpow.pop %v1476
        %v1478 = vmul.f32 %v1459, 1.442695
        %v1479 = vpow.pop %v1478
        %v1480 = vmul.f32 %v1460, 1.442695
        %v1481 = vpow.pop %v1480
        %v1482 = vmul.f32 %v1461, 1.442695
        %v1483 = vpow.pop %v1482
        %v1484 = vmul.f32 %v1462, 1.442695
        %v1485 = vpow.pop %v1484
        %v1486 = vmul.f32 %v1463, 1.442695
        %v1487 = vpow.pop %v1486
        %v1488 = vmul.f32 %v1428, %v1465
        %v1489 = vmul.f32 %v1429, %v1467
        %v1490 = vmul.f32 %v1430, %v1469
        %v1491 = vmul.f32 %v1431, %v1471
        %v1492 = vmul.f32 %v1432, %v1473
        %v1493 = vmul.f32 %v1433, %v1475
        %v1494 = vmul.f32 %v1434, %v1477
        %v1495 = vmul.f32 %v1435, %v1479
        %v1496 = vmul.f32 %v1436, %v1481
        %v1497 = vmul.f32 %v1437, %v1483
        %v1498 = vmul.f32 %v1438, %v1485
        %v1499 = vmul.f32 %v1439, %v1487
        %v1500 = vsub.f32 1.0, %v1488
        %v1501 = vsub.f32 1.0, %v1489
        %v1502 = vsub.f32 1.0, %v1490
        %v1503 = vsub.f32 1.0, %v1491
        %v1504 = vsub.f32 1.0, %v1492
        %v1505 = vsub.f32 1.0, %v1493
        %v1506 = vsub.f32 1.0, %v1494
        %v1507 = vsub.f32 1.0, %v1495
        %v1508 = vsub.f32 1.0, %v1496
        %v1509 = vsub.f32 1.0, %v1497
        %v1510 = vsub.f32 1.0, %v1498
        %v1511 = vsub.f32 1.0, %v1499
        %vm1512 = vcmp.ge.f32.partialorder %v1104, 0.0
        %vm1513 = vcmp.ge.f32.partialorder %v1105, 0.0
        %vm1514 = vcmp.ge.f32.partialorder %v1106, 0.0
        %vm1515 = vcmp.ge.f32.partialorder %v1107, 0.0
        %vm1516 = vcmp.ge.f32.partialorder %v1108, 0.0
        %vm1517 = vcmp.ge.f32.partialorder %v1109, 0.0
        %vm1518 = vcmp.ge.f32.partialorder %v1110, 0.0
        %vm1519 = vcmp.ge.f32.partialorder %v1111, 0.0
        %vm1520 = vcmp.ge.f32.partialorder %v1112, 0.0
        %vm1521 = vcmp.ge.f32.partialorder %v1113, 0.0
        %vm1522 = vcmp.ge.f32.partialorder %v1114, 0.0
        %vm1523 = vcmp.ge.f32.partialorder %v1115, 0.0
        %v1524 = vsub.f32 0.0, %v1500
        %v1525 = vsub.f32 0.0, %v1501
        %v1526 = vsub.f32 0.0, %v1502
        %v1527 = vsub.f32 0.0, %v1503
        %v1528 = vsub.f32 0.0, %v1504
        %v1529 = vsub.f32 0.0, %v1505
        %v1530 = vsub.f32 0.0, %v1506
        %v1531 = vsub.f32 0.0, %v1507
        %v1532 = vsub.f32 0.0, %v1508
        %v1533 = vsub.f32 0.0, %v1509
        %v1534 = vsub.f32 0.0, %v1510
        %v1535 = vsub.f32 0.0, %v1511
        %v1536 = vsel %vm1512, %v1500, %v1524
        %v1537 = vsel %vm1513, %v1501, %v1525
        %v1538 = vsel %vm1514, %v1502, %v1526
        %v1539 = vsel %vm1515, %v1503, %v1527
        %v1540 = vsel %vm1516, %v1504, %v1528
        %v1541 = vsel %vm1517, %v1505, %v1529
        %v1542 = vsel %vm1518, %v1506, %v1530
        %v1543 = vsel %vm1519, %v1507, %v1531
        %v1544 = vsel %vm1520, %v1508, %v1532
        %v1545 = vsel %vm1521, %v1509, %v1533
        %v1546 = vsel %vm1522, %v1510, %v1534
        %v1547 = vsel %vm1523, %v1511, %v1535
        %v1548 = vadd.f32 %v1536, 1.0
        %v1549 = vadd.f32 %v1537, 1.0
        %v1550 = vadd.f32 %v1538, 1.0
        %v1551 = vadd.f32 %v1539, 1.0
        %v1552 = vadd.f32 %v1540, 1.0
        %v1553 = vadd.f32 %v1541, 1.0
        %v1554 = vadd.f32 %v1542, 1.0
        %v1555 = vadd.f32 %v1543, 1.0
        %v1556 = vadd.f32 %v1544, 1.0
        %v1557 = vadd.f32 %v1545, 1.0
        %v1558 = vadd.f32 %v1546, 1.0
        %v1559 = vadd.f32 %v1547, 1.0
        %v1560 = vmul.f32 %v1092, %v1548
        %v1561 = vmul.f32 %v1093, %v1549
        %v1562 = vmul.f32 %v1094, %v1550
        %v1563 = vmul.f32 %v1095, %v1551
        %v1564 = vmul.f32 %v1096, %v1552
        %v1565 = vmul.f32 %v1097, %v1553
        %v1566 = vmul.f32 %v1098, %v1554
        %v1567 = vmul.f32 %v1099, %v1555
        %v1568 = vmul.f32 %v1100, %v1556
        %v1569 = vmul.f32 %v1101, %v1557
        %v1570 = vmul.f32 %v1102, %v1558
        %v1571 = vmul.f32 %v1103, %v1559
        %v1572 = vadd.f32 %v1560, %v335
        %v1573 = vadd.f32 %v1561, %v338
        %v1574 = vadd.f32 %v1562, %v340
        %v1575 = vadd.f32 %v1563, %v342
        %v1576 = vadd.f32 %v1564, %v345
        %v1577 = vadd.f32 %v1565, %v348
        %v1578 = vadd.f32 %v1566, %v350
        %v1579 = vadd.f32 %v1567, %v352
        %v1580 = vadd.f32 %v1568, %v355
        %v1581 = vadd.f32 %v1569, %v358
        %v1582 = vadd.f32 %v1570, %v360
        %v1583 = vadd.f32 %v1571, %v362
        %v1584 = vlaneseq
        %vm1585 = vcmp.ge.s32.totalorder %v1584, 0
        %vm1586 = vcmp.lt.s32.totalorder %v1584, 256
        %vm1587 = vmand %vm1585, %vm1586
        %1588 = vst.msk [vmem:[#allocation2] ss:$8 sm:$0x3] %vm1587, 0.0
        %1589 = vst.msk [vmem:[#allocation2] ss:$8 sm:$0x0] %vm1587, 0.0
        %s1590 = scalar_lea.vmem [#allocation2], 48
        %1591 = vst.msk [vmem:[%s1590] ss:$8 sm:$0x3] %vm1587, 0.0
        %1592 = vst.msk [vmem:[%s1590] ss:$8 sm:$0x0] %vm1587, 0.0
        %s1593 = scalar_lea.vmem [#allocation2], 96
        %1594 = vst.msk [vmem:[%s1593] ss:$8 sm:$0x3] %vm1587, 0.0
        %1595 = vst.msk [vmem:[%s1593] ss:$8 sm:$0x0] %vm1587, 0.0
        %s1596 = scalar_lea.vmem [#allocation2], 33
        %1597 = vst.msk [vmem:[%s1596] ss:$8 sm:$0x3] %vm1587, 0.0
        %1598 = vst.msk [vmem:[%s1596] ss:$8 sm:$0x0] %vm1587, 0.0
        %s1599 = scalar_lea.vmem [#allocation2], 81
        %1600 = vst.msk [vmem:[%s1599] ss:$8 sm:$0x3] %vm1587, 0.0
        %1601 = vst.msk [vmem:[%s1599] ss:$8 sm:$0x0] %vm1587, 0.0
        %s1602 = scalar_lea.vmem [#allocation2], 129
        %1603 = vst.msk [vmem:[%s1602] ss:$8 sm:$0x3] %vm1587, 0.0
        %1604 = vst.msk [vmem:[%s1602] ss:$8 sm:$0x0] %vm1587, 0.0
        %vm1617 = vcmask 1040384
        %v1618 = vrot.slane %v1572, 7
        %v1619 = vrot.slane %v1573, 7
        %v1620 = vrot.slane %v1574, 7
        %v1621 = vsel %vm1617, %v1618, %v1620
        %v1622 = vrot.slane %v1575, 7
        %v1623 = vsel %vm1617, %v1619, %v1622
        %v1624 = vrot.slane %v1576, 7
        %v1625 = vrot.slane %v1577, 7
        %v1626 = vrot.slane %v1578, 7
        %v1627 = vsel %vm1617, %v1624, %v1626
        %v1628 = vrot.slane %v1579, 7
        %v1629 = vsel %vm1617, %v1625, %v1628
        %v1630 = vrot.slane %v1580, 7
        %v1631 = vrot.slane %v1581, 7
        %v1632 = vrot.slane %v1582, 7
        %v1633 = vsel %vm1617, %v1630, %v1632
        %v1634 = vrot.slane %v1583, 7
        %v1635 = vsel %vm1617, %v1631, %v1634
        %1654 = vst [vmem:[#allocation2] sm:$0xfe] %v1618
        %1655 = vst [vmem:[#allocation2 + $0x8] sm:$0xfe] %v1619
        %1656 = vst [vmem:[#allocation2 + $0x10] sm:$0xff] %v1621
        %1657 = vst [vmem:[#allocation2 + $0x18] sm:$0xff] %v1623
        %1658 = vst [vmem:[#allocation2 + $0x20] sm:$0x1] %v1620
        %1659 = vst [vmem:[#allocation2 + $0x28] sm:$0x1] %v1622
        %1660 = vst [vmem:[#allocation2 + $0x30] sm:$0xfe] %v1624
        %1661 = vst [vmem:[#allocation2 + $0x38] sm:$0xfe] %v1625
        %1662 = vst [vmem:[#allocation2 + $0x40] sm:$0xff] %v1627
        %1663 = vst [vmem:[#allocation2 + $0x48] sm:$0xff] %v1629
        %1664 = vst [vmem:[#allocation2 + $0x50] sm:$0x1] %v1626
        %1665 = vst [vmem:[#allocation2 + $0x58] sm:$0x1] %v1628
        %1666 = vst [vmem:[#allocation2 + $0x60] sm:$0xfe] %v1630
        %1667 = vst [vmem:[#allocation2 + $0x68] sm:$0xfe] %v1631
        %1668 = vst [vmem:[#allocation2 + $0x70] sm:$0xff] %v1633
        %1669 = vst [vmem:[#allocation2 + $0x78] sm:$0xff] %v1635
        %1670 = vst [vmem:[#allocation2 + $0x80] sm:$0x1] %v1632
        %1671 = vst [vmem:[#allocation2 + $0x88] sm:$0x1] %v1634
        %v1672 = vld [vmem:[#allocation2] sm:$0xff]
        %v1673 = vld [vmem:[#allocation2 + $0x8] sm:$0xff]
        %v1674 = vld [vmem:[#allocation2 + $0x10] sm:$0xff]
        %v1675 = vld [vmem:[#allocation2 + $0x18] sm:$0xff]
        %v1676 = vld [vmem:[#allocation2 + $0x30] sm:$0xff]
        %v1677 = vld [vmem:[#allocation2 + $0x38] sm:$0xff]
        %v1678 = vld [vmem:[#allocation2 + $0x40] sm:$0xff]
        %v1679 = vld [vmem:[#allocation2 + $0x48] sm:$0xff]
        %v1680 = vld [vmem:[#allocation2 + $0x60] sm:$0xff]
        %v1681 = vld [vmem:[#allocation2 + $0x68] sm:$0xff]
        %v1682 = vld [vmem:[#allocation2 + $0x70] sm:$0xff]
        %v1683 = vld [vmem:[#allocation2 + $0x78] sm:$0xff]
        %v1684 = vld [vmem:[#allocation9] sm:$0xff]
        %v1685 = vld [vmem:[#allocation9 + $0x8] sm:$0xff]
        %v1686 = vld [vmem:[#allocation9 + $0x10] sm:$0xff]
        %v1687 = vld [vmem:[#allocation9 + $0x18] sm:$0xff]
        %v1688 = vld [vmem:[#allocation9 + $0x20] sm:$0xff]
        %v1689 = vld [vmem:[#allocation9 + $0x28] sm:$0xff]
        %v1690 = vld [vmem:[#allocation9 + $0x30] sm:$0xff]
        %v1691 = vld [vmem:[#allocation9 + $0x38] sm:$0xff]
        %v1692 = vld [vmem:[#allocation9 + $0x40] sm:$0xff]
        %v1693 = vld [vmem:[#allocation9 + $0x48] sm:$0xff]
        %v1694 = vld [vmem:[#allocation9 + $0x50] sm:$0xff]
        %v1695 = vld [vmem:[#allocation9 + $0x58] sm:$0xff]
        %v1696 = vld [vmem:[#allocation9 + $0x60] sm:$0xff]
        %v1697 = vld [vmem:[#allocation9 + $0x68] sm:$0xff]
        %v1698 = vld [vmem:[#allocation9 + $0x70] sm:$0xff]
        %v1699 = vld [vmem:[#allocation9 + $0x78] sm:$0xff]
        %v1700 = vld [vmem:[#allocation9 + $0x80] sm:$0xff]
        %v1701 = vld [vmem:[#allocation9 + $0x88] sm:$0xff]
        %v1702 = vld [vmem:[#allocation9 + $0x90] sm:$0xff]
        %v1703 = vld [vmem:[#allocation9 + $0x98] sm:$0xff]
        %v1704 = vld [vmem:[#allocation9 + $0xa0] sm:$0xff]
        %v1705 = vld [vmem:[#allocation9 + $0xa8] sm:$0xff]
        %v1706 = vld [vmem:[#allocation9 + $0xb0] sm:$0xff]
        %v1707 = vld [vmem:[#allocation9 + $0xb8] sm:$0xff]
        %v1708 = vld [vmem:[#allocation9 + $0xc0] sm:$0xff]
        %v1709 = vld [vmem:[#allocation9 + $0xc8] sm:$0xff]
        %v1710 = vld [vmem:[#allocation9 + $0xd0] sm:$0xff]
        %v1711 = vld [vmem:[#allocation9 + $0xd8] sm:$0xff]
        %v1712 = vld [vmem:[#allocation9 + $0xe0] sm:$0xff]
        %v1713 = vld [vmem:[#allocation9 + $0xe8] sm:$0xff]
        %v1714 = vld [vmem:[#allocation9 + $0xf0] sm:$0xff]
        %v1715 = vld [vmem:[#allocation9 + $0xf8] sm:$0xff]
        %v1716 = vld [vmem:[#allocation9 + $0x100] sm:$0xff]
        %v1717 = vld [vmem:[#allocation9 + $0x108] sm:$0xff]
        %v1718 = vld [vmem:[#allocation9 + $0x110] sm:$0xff]
        %v1719 = vld [vmem:[#allocation9 + $0x118] sm:$0xff]
        %v1720 = vld [vmem:[#allocation9 + $0x120] sm:$0xff]
        %v1721 = vld [vmem:[#allocation9 + $0x128] sm:$0xff]
        %v1722 = vld [vmem:[#allocation9 + $0x130] sm:$0xff]
        %v1723 = vld [vmem:[#allocation9 + $0x138] sm:$0xff]
        %v1724 = vld [vmem:[#allocation9 + $0x140] sm:$0xff]
        %v1725 = vld [vmem:[#allocation9 + $0x148] sm:$0xff]
        %v1726 = vld [vmem:[#allocation9 + $0x150] sm:$0xff]
        %v1727 = vld [vmem:[#allocation9 + $0x158] sm:$0xff]
        %v1728 = vld [vmem:[#allocation9 + $0x160] sm:$0xff]
        %v1729 = vld [vmem:[#allocation9 + $0x168] sm:$0xff]
        %v1730 = vld [vmem:[#allocation9 + $0x170] sm:$0xff]
        %v1731 = vld [vmem:[#allocation9 + $0x178] sm:$0xff]
        %v1732 = vld [vmem:[#allocation9 + $0x180] sm:$0xff]
        %v1733 = vld [vmem:[#allocation9 + $0x188] sm:$0xff]
        %v1734 = vld [vmem:[#allocation9 + $0x190] sm:$0xff]
        %v1735 = vld [vmem:[#allocation9 + $0x198] sm:$0xff]
        %v1736 = vld [vmem:[#allocation9 + $0x1a0] sm:$0xff]
        %v1737 = vld [vmem:[#allocation9 + $0x1a8] sm:$0xff]
        %v1738 = vld [vmem:[#allocation9 + $0x1b0] sm:$0xff]
        %v1739 = vld [vmem:[#allocation9 + $0x1b8] sm:$0xff]
        %v1740 = vld [vmem:[#allocation9 + $0x1c0] sm:$0xff]
        %v1741 = vld [vmem:[#allocation9 + $0x1c8] sm:$0xff]
        %v1742 = vld [vmem:[#allocation9 + $0x1d0] sm:$0xff]
        %v1743 = vld [vmem:[#allocation9 + $0x1d8] sm:$0xff]
        %v1744 = vld [vmem:[#allocation9 + $0x1e0] sm:$0xff]
        %v1745 = vld [vmem:[#allocation9 + $0x1e8] sm:$0xff]
        %v1746 = vld [vmem:[#allocation9 + $0x1f0] sm:$0xff]
        %v1747 = vld [vmem:[#allocation9 + $0x1f8] sm:$0xff]
        %v1748 = vld [vmem:[#allocation2] sm:$0xfe]
        %v1749 = vld [vmem:[#allocation2 + $0x8] sm:$0xfe]
        %v1750 = vld [vmem:[#allocation2 + $0x20] sm:$0x1]
        %v1751 = vld [vmem:[#allocation2 + $0x28] sm:$0x1]
        %v1752 = vld [vmem:[#allocation2 + $0x30] sm:$0xfe]
        %v1753 = vld [vmem:[#allocation2 + $0x38] sm:$0xfe]
        %v1754 = vld [vmem:[#allocation2 + $0x50] sm:$0x1]
        %v1755 = vld [vmem:[#allocation2 + $0x58] sm:$0x1]
        %v1756 = vld [vmem:[#allocation2 + $0x60] sm:$0xfe]
        %v1757 = vld [vmem:[#allocation2 + $0x68] sm:$0xfe]
        %v1758 = vld [vmem:[#allocation2 + $0x80] sm:$0x1]
        %v1759 = vld [vmem:[#allocation2 + $0x88] sm:$0x1]
        %v1778 = vrot.slane %v1748, 1
        %v1779 = vrot.slane %v1674, 1
        %v1780 = vsel %vm332, %v1778, %v1779
        %v1781 = vrot.slane %v1749, 1
        %v1782 = vrot.slane %v1675, 1
        %v1783 = vsel %vm332, %v1781, %v1782
        %v1784 = vrot.slane %v1750, 1
        %v1785 = vsel %vm332, %v1779, %v1784
        %v1786 = vrot.slane %v1751, 1
        %v1787 = vsel %vm332, %v1782, %v1786
        %v1788 = vrot.slane %v1752, 1
        %v1789 = vrot.slane %v1678, 1
        %v1790 = vsel %vm332, %v1788, %v1789
        %v1791 = vrot.slane %v1753, 1
        %v1792 = vrot.slane %v1679, 1
        %v1793 = vsel %vm332, %v1791, %v1792
        %v1794 = vrot.slane %v1754, 1
        %v1795 = vsel %vm332, %v1789, %v1794
        %v1796 = vrot.slane %v1755, 1
        %v1797 = vsel %vm332, %v1792, %v1796
        %v1798 = vrot.slane %v1756, 1
        %v1799 = vrot.slane %v1682, 1
        %v1800 = vsel %vm332, %v1798, %v1799
        %v1801 = vrot.slane %v1757, 1
        %v1802 = vrot.slane %v1683, 1
        %v1803 = vsel %vm332, %v1801, %v1802
        %v1804 = vrot.slane %v1758, 1
        %v1805 = vsel %vm332, %v1799, %v1804
        %v1806 = vrot.slane %v1759, 1
        %v1807 = vsel %vm332, %v1802, %v1806
        %s1820 = scalar_lea.vmem [#allocation9], 512
        %v1821 = vld [vmem:[%s1820] sm:$0xff]
        %v1822 = vld [vmem:[%s1820 + $0x8] sm:$0xff]
        %v1823 = vld [vmem:[%s1820 + $0x10] sm:$0xff]
        %v1824 = vld [vmem:[%s1820 + $0x18] sm:$0xff]
        %v1825 = vld [vmem:[%s1820 + $0x20] sm:$0xff]
        %v1826 = vld [vmem:[%s1820 + $0x28] sm:$0xff]
        %v1827 = vld [vmem:[%s1820 + $0x30] sm:$0xff]
        %v1828 = vld [vmem:[%s1820 + $0x38] sm:$0xff]
        %v1829 = vld [vmem:[%s1820 + $0x40] sm:$0xff]
        %v1830 = vld [vmem:[%s1820 + $0x48] sm:$0xff]
        %v1831 = vld [vmem:[%s1820 + $0x50] sm:$0xff]
        %v1832 = vld [vmem:[%s1820 + $0x58] sm:$0xff]
        %v1833 = vld [vmem:[%s1820 + $0x60] sm:$0xff]
        %v1834 = vld [vmem:[%s1820 + $0x68] sm:$0xff]
        %v1835 = vld [vmem:[%s1820 + $0x70] sm:$0xff]
        %v1836 = vld [vmem:[%s1820 + $0x78] sm:$0xff]
        %v1837 = vld [vmem:[%s1820 + $0x80] sm:$0xff]
        %v1838 = vld [vmem:[%s1820 + $0x88] sm:$0xff]
        %v1839 = vld [vmem:[%s1820 + $0x90] sm:$0xff]
        %v1840 = vld [vmem:[%s1820 + $0x98] sm:$0xff]
        %v1841 = vld [vmem:[%s1820 + $0xa0] sm:$0xff]
        %v1842 = vld [vmem:[%s1820 + $0xa8] sm:$0xff]
        %v1843 = vld [vmem:[%s1820 + $0xb0] sm:$0xff]
        %v1844 = vld [vmem:[%s1820 + $0xb8] sm:$0xff]
        %v1845 = vld [vmem:[%s1820 + $0xc0] sm:$0xff]
        %v1846 = vld [vmem:[%s1820 + $0xc8] sm:$0xff]
        %v1847 = vld [vmem:[%s1820 + $0xd0] sm:$0xff]
        %v1848 = vld [vmem:[%s1820 + $0xd8] sm:$0xff]
        %v1849 = vld [vmem:[%s1820 + $0xe0] sm:$0xff]
        %v1850 = vld [vmem:[%s1820 + $0xe8] sm:$0xff]
        %v1851 = vld [vmem:[%s1820 + $0xf0] sm:$0xff]
        %v1852 = vld [vmem:[%s1820 + $0xf8] sm:$0xff]
        %v1853 = vld [vmem:[%s1820 + $0x100] sm:$0xff]
        %v1854 = vld [vmem:[%s1820 + $0x108] sm:$0xff]
        %v1855 = vld [vmem:[%s1820 + $0x110] sm:$0xff]
        %v1856 = vld [vmem:[%s1820 + $0x118] sm:$0xff]
        %v1857 = vld [vmem:[%s1820 + $0x120] sm:$0xff]
        %v1858 = vld [vmem:[%s1820 + $0x128] sm:$0xff]
        %v1859 = vld [vmem:[%s1820 + $0x130] sm:$0xff]
        %v1860 = vld [vmem:[%s1820 + $0x138] sm:$0xff]
        %v1861 = vld [vmem:[%s1820 + $0x140] sm:$0xff]
        %v1862 = vld [vmem:[%s1820 + $0x148] sm:$0xff]
        %v1863 = vld [vmem:[%s1820 + $0x150] sm:$0xff]
        %v1864 = vld [vmem:[%s1820 + $0x158] sm:$0xff]
        %v1865 = vld [vmem:[%s1820 + $0x160] sm:$0xff]
        %v1866 = vld [vmem:[%s1820 + $0x168] sm:$0xff]
        %v1867 = vld [vmem:[%s1820 + $0x170] sm:$0xff]
        %v1868 = vld [vmem:[%s1820 + $0x178] sm:$0xff]
        %v1869 = vld [vmem:[%s1820 + $0x180] sm:$0xff]
        %v1870 = vld [vmem:[%s1820 + $0x188] sm:$0xff]
        %v1871 = vld [vmem:[%s1820 + $0x190] sm:$0xff]
        %v1872 = vld [vmem:[%s1820 + $0x198] sm:$0xff]
        %v1873 = vld [vmem:[%s1820 + $0x1a0] sm:$0xff]
        %v1874 = vld [vmem:[%s1820 + $0x1a8] sm:$0xff]
        %v1875 = vld [vmem:[%s1820 + $0x1b0] sm:$0xff]
        %v1876 = vld [vmem:[%s1820 + $0x1b8] sm:$0xff]
        %v1877 = vld [vmem:[%s1820 + $0x1c0] sm:$0xff]
        %v1878 = vld [vmem:[%s1820 + $0x1c8] sm:$0xff]
        %v1879 = vld [vmem:[%s1820 + $0x1d0] sm:$0xff]
        %v1880 = vld [vmem:[%s1820 + $0x1d8] sm:$0xff]
        %v1881 = vld [vmem:[%s1820 + $0x1e0] sm:$0xff]
        %v1882 = vld [vmem:[%s1820 + $0x1e8] sm:$0xff]
        %v1883 = vld [vmem:[%s1820 + $0x1f0] sm:$0xff]
        %v1884 = vld [vmem:[%s1820 + $0x1f8] sm:$0xff]
        %1885 = vmatpush.msra.mxu0 %v1851
        %1886 = vmatpush.msra.mxu0 %v1849
        %1887 = vmatpush.msra.mxu0 %v1847
        %1888 = vmatpush.msra.mxu0 %v1845
        %1889 = vmatpush.msra.mxu0 %v1843
        %1890 = vmatpush.msra.mxu0 %v1841
        %1891 = vmatpush.msra.mxu0 %v1839
        %1892 = vmatpush.msra.mxu0 %v1837
        %1893 = vmatpush.msra.mxu0 %v1835
        %1894 = vmatpush.msra.mxu0 %v1833
        %1895 = vmatpush.msra.mxu0 %v1831
        %1896 = vmatpush.msra.mxu0 %v1829
        %1897 = vmatpush.msra.mxu0 %v1827
        %1898 = vmatpush.msra.mxu0 %v1825
        %1899 = vmatpush.msra.mxu0 %v1823
        %1900 = vmatpush.msra.mxu0 %v1821
        %1901 = vmatmul.f32.gmra.mxu0 %v1780
        %v1902 = vpop.f32.mrf.mxu0
        %v1903 = vadd.f32 0.0, %v1902
        %1904 = vmatmul.f32.gmra.mxu0 %v1785
        %v1905 = vpop.f32.mrf.mxu0
        %v1906 = vadd.f32 0.0, %v1905
        %1907 = vmatmul.f32.gmra.mxu0 %v1790
        %v1908 = vpop.f32.mrf.mxu0
        %v1909 = vadd.f32 0.0, %v1908
        %1910 = vmatmul.f32.gmra.mxu0 %v1795
        %v1911 = vpop.f32.mrf.mxu0
        %v1912 = vadd.f32 0.0, %v1911
        %1913 = vmatmul.f32.gmra.mxu0 %v1800
        %v1914 = vpop.f32.mrf.mxu0
        %v1915 = vadd.f32 0.0, %v1914
        %1916 = vmatmul.f32.gmra.mxu0 %v1805
        %v1917 = vpop.f32.mrf.mxu0
        %v1918 = vadd.f32 0.0, %v1917
        %1919 = vdwg.mxu0
        %1920 = vmatpush.msra.mxu0 %v1883
        %1921 = vmatpush.msra.mxu0 %v1881
        %1922 = vmatpush.msra.mxu0 %v1879
        %1923 = vmatpush.msra.mxu0 %v1877
        %1924 = vmatpush.msra.mxu0 %v1875
        %1925 = vmatpush.msra.mxu0 %v1873
        %1926 = vmatpush.msra.mxu0 %v1871
        %1927 = vmatpush.msra.mxu0 %v1869
        %1928 = vmatpush.msra.mxu0 %v1867
        %1929 = vmatpush.msra.mxu0 %v1865
        %1930 = vmatpush.msra.mxu0 %v1863
        %1931 = vmatpush.msra.mxu0 %v1861
        %1932 = vmatpush.msra.mxu0 %v1859
        %1933 = vmatpush.msra.mxu0 %v1857
        %1934 = vmatpush.msra.mxu0 %v1855
        %1935 = vmatpush.msra.mxu0 %v1853
        %1936 = vmatmul.f32.gmra.mxu0 %v1783
        %v1937 = vpop.f32.mrf.mxu0
        %v1938 = vadd.f32 %v1903, %v1937
        %1939 = vmatmul.f32.gmra.mxu0 %v1787
        %v1940 = vpop.f32.mrf.mxu0
        %v1941 = vadd.f32 %v1906, %v1940
        %1942 = vmatmul.f32.gmra.mxu0 %v1793
        %v1943 = vpop.f32.mrf.mxu0
        %v1944 = vadd.f32 %v1909, %v1943
        %1945 = vmatmul.f32.gmra.mxu0 %v1797
        %v1946 = vpop.f32.mrf.mxu0
        %v1947 = vadd.f32 %v1912, %v1946
        %1948 = vmatmul.f32.gmra.mxu0 %v1803
        %v1949 = vpop.f32.mrf.mxu0
        %v1950 = vadd.f32 %v1915, %v1949
        %1951 = vmatmul.f32.gmra.mxu0 %v1807
        %v1952 = vpop.f32.mrf.mxu0
        %v1953 = vadd.f32 %v1918, %v1952
        %1954 = vdwg.mxu0
        %1955 = vmatpush.msra.mxu0 %v1852
        %1956 = vmatpush.msra.mxu0 %v1850
        %1957 = vmatpush.msra.mxu0 %v1848
        %1958 = vmatpush.msra.mxu0 %v1846
        %1959 = vmatpush.msra.mxu0 %v1844
        %1960 = vmatpush.msra.mxu0 %v1842
        %1961 = vmatpush.msra.mxu0 %v1840
        %1962 = vmatpush.msra.mxu0 %v1838
        %1963 = vmatpush.msra.mxu0 %v1836
        %1964 = vmatpush.msra.mxu0 %v1834
        %1965 = vmatpush.msra.mxu0 %v1832
        %1966 = vmatpush.msra.mxu0 %v1830
        %1967 = vmatpush.msra.mxu0 %v1828
        %1968 = vmatpush.msra.mxu0 %v1826
        %1969 = vmatpush.msra.mxu0 %v1824
        %1970 = vmatpush.msra.mxu0 %v1822
        %1971 = vmatmul.f32.gmra.mxu0 %v1780
        %v1972 = vpop.f32.mrf.mxu0
        %v1973 = vadd.f32 0.0, %v1972
        %1974 = vmatmul.f32.gmra.mxu0 %v1785
        %v1975 = vpop.f32.mrf.mxu0
        %v1976 = vadd.f32 0.0, %v1975
        %1977 = vmatmul.f32.gmra.mxu0 %v1790
        %v1978 = vpop.f32.mrf.mxu0
        %v1979 = vadd.f32 0.0, %v1978
        %1980 = vmatmul.f32.gmra.mxu0 %v1795
        %v1981 = vpop.f32.mrf.mxu0
        %v1982 = vadd.f32 0.0, %v1981
        %1983 = vmatmul.f32.gmra.mxu0 %v1800
        %v1984 = vpop.f32.mrf.mxu0
        %v1985 = vadd.f32 0.0, %v1984
        %1986 = vmatmul.f32.gmra.mxu0 %v1805
        %v1987 = vpop.f32.mrf.mxu0
        %v1988 = vadd.f32 0.0, %v1987
        %1989 = vdwg.mxu0
        %1990 = vmatpush.msra.mxu0 %v1884
        %1991 = vmatpush.msra.mxu0 %v1882
        %1992 = vmatpush.msra.mxu0 %v1880
        %1993 = vmatpush.msra.mxu0 %v1878
        %1994 = vmatpush.msra.mxu0 %v1876
        %1995 = vmatpush.msra.mxu0 %v1874
        %1996 = vmatpush.msra.mxu0 %v1872
        %1997 = vmatpush.msra.mxu0 %v1870
        %1998 = vmatpush.msra.mxu0 %v1868
        %1999 = vmatpush.msra.mxu0 %v1866
        %2000 = vmatpush.msra.mxu0 %v1864
        %2001 = vmatpush.msra.mxu0 %v1862
        %2002 = vmatpush.msra.mxu0 %v1860
        %2003 = vmatpush.msra.mxu0 %v1858
        %2004 = vmatpush.msra.mxu0 %v1856
        %2005 = vmatpush.msra.mxu0 %v1854
        %2006 = vmatmul.f32.gmra.mxu0 %v1783
        %v2007 = vpop.f32.mrf.mxu0
        %v2008 = vadd.f32 %v1973, %v2007
        %2009 = vmatmul.f32.gmra.mxu0 %v1787
        %v2010 = vpop.f32.mrf.mxu0
        %v2011 = vadd.f32 %v1976, %v2010
        %2012 = vmatmul.f32.gmra.mxu0 %v1793
        %v2013 = vpop.f32.mrf.mxu0
        %v2014 = vadd.f32 %v1979, %v2013
        %2015 = vmatmul.f32.gmra.mxu0 %v1797
        %v2016 = vpop.f32.mrf.mxu0
        %v2017 = vadd.f32 %v1982, %v2016
        %2018 = vmatmul.f32.gmra.mxu0 %v1803
        %v2019 = vpop.f32.mrf.mxu0
        %v2020 = vadd.f32 %v1985, %v2019
        %2021 = vmatmul.f32.gmra.mxu0 %v1807
        %v2022 = vpop.f32.mrf.mxu0
        %v2023 = vadd.f32 %v1988, %v2022
        %2024 = vdwg.mxu0
        %2025 = vmatpush.msra.mxu0 %v1714
        %2026 = vmatpush.msra.mxu0 %v1712
        %2027 = vmatpush.msra.mxu0 %v1710
        %2028 = vmatpush.msra.mxu0 %v1708
        %2029 = vmatpush.msra.mxu0 %v1706
        %2030 = vmatpush.msra.mxu0 %v1704
        %2031 = vmatpush.msra.mxu0 %v1702
        %2032 = vmatpush.msra.mxu0 %v1700
        %2033 = vmatpush.msra.mxu0 %v1698
        %2034 = vmatpush.msra.mxu0 %v1696
        %2035 = vmatpush.msra.mxu0 %v1694
        %2036 = vmatpush.msra.mxu0 %v1692
        %2037 = vmatpush.msra.mxu0 %v1690
        %2038 = vmatpush.msra.mxu0 %v1688
        %2039 = vmatpush.msra.mxu0 %v1686
        %2040 = vmatpush.msra.mxu0 %v1684
        %2041 = vmatmul.f32.gmra.mxu0 %v1672
        %v2042 = vpop.f32.mrf.mxu0
        %v2043 = vadd.f32 %v1938, %v2042
        %2044 = vmatmul.f32.gmra.mxu0 %v1674
        %v2045 = vpop.f32.mrf.mxu0
        %v2046 = vadd.f32 %v1941, %v2045
        %2047 = vmatmul.f32.gmra.mxu0 %v1676
        %v2048 = vpop.f32.mrf.mxu0
        %v2049 = vadd.f32 %v1944, %v2048
        %2050 = vmatmul.f32.gmra.mxu0 %v1678
        %v2051 = vpop.f32.mrf.mxu0
        %v2052 = vadd.f32 %v1947, %v2051
        %2053 = vmatmul.f32.gmra.mxu0 %v1680
        %v2054 = vpop.f32.mrf.mxu0
        %v2055 = vadd.f32 %v1950, %v2054
        %2056 = vmatmul.f32.gmra.mxu0 %v1682
        %v2057 = vpop.f32.mrf.mxu0
        %v2058 = vadd.f32 %v1953, %v2057
        %2059 = vdwg.mxu0
        %2060 = vmatpush.msra.mxu0 %v1746
        %2061 = vmatpush.msra.mxu0 %v1744
        %2062 = vmatpush.msra.mxu0 %v1742
        %2063 = vmatpush.msra.mxu0 %v1740
        %2064 = vmatpush.msra.mxu0 %v1738
        %2065 = vmatpush.msra.mxu0 %v1736
        %2066 = vmatpush.msra.mxu0 %v1734
        %2067 = vmatpush.msra.mxu0 %v1732
        %2068 = vmatpush.msra.mxu0 %v1730
        %2069 = vmatpush.msra.mxu0 %v1728
        %2070 = vmatpush.msra.mxu0 %v1726
        %2071 = vmatpush.msra.mxu0 %v1724
        %2072 = vmatpush.msra.mxu0 %v1722
        %2073 = vmatpush.msra.mxu0 %v1720
        %2074 = vmatpush.msra.mxu0 %v1718
        %2075 = vmatpush.msra.mxu0 %v1716
        %2076 = vmatmul.f32.gmra.mxu0 %v1673
        %v2077 = vpop.f32.mrf.mxu0
        %v2078 = vadd.f32 %v2043, %v2077
        %2079 = vmatmul.f32.gmra.mxu0 %v1675
        %v2080 = vpop.f32.mrf.mxu0
        %v2081 = vadd.f32 %v2046, %v2080
        %2082 = vmatmul.f32.gmra.mxu0 %v1677
        %v2083 = vpop.f32.mrf.mxu0
        %v2084 = vadd.f32 %v2049, %v2083
        %2085 = vmatmul.f32.gmra.mxu0 %v1679
        %v2086 = vpop.f32.mrf.mxu0
        %v2087 = vadd.f32 %v2052, %v2086
        %2088 = vmatmul.f32.gmra.mxu0 %v1681
        %v2089 = vpop.f32.mrf.mxu0
        %v2090 = vadd.f32 %v2055, %v2089
        %2091 = vmatmul.f32.gmra.mxu0 %v1683
        %v2092 = vpop.f32.mrf.mxu0
        %v2093 = vadd.f32 %v2058, %v2092
        %2094 = vdwg.mxu0
        %2095 = vmatpush.msra.mxu0 %v1715
        %2096 = vmatpush.msra.mxu0 %v1713
        %2097 = vmatpush.msra.mxu0 %v1711
        %2098 = vmatpush.msra.mxu0 %v1709
        %2099 = vmatpush.msra.mxu0 %v1707
        %2100 = vmatpush.msra.mxu0 %v1705
        %2101 = vmatpush.msra.mxu0 %v1703
        %2102 = vmatpush.msra.mxu0 %v1701
        %2103 = vmatpush.msra.mxu0 %v1699
        %2104 = vmatpush.msra.mxu0 %v1697
        %2105 = vmatpush.msra.mxu0 %v1695
        %2106 = vmatpush.msra.mxu0 %v1693
        %2107 = vmatpush.msra.mxu0 %v1691
        %2108 = vmatpush.msra.mxu0 %v1689
        %2109 = vmatpush.msra.mxu0 %v1687
        %2110 = vmatpush.msra.mxu0 %v1685
        %2111 = vmatmul.f32.gmra.mxu0 %v1672
        %v2112 = vpop.f32.mrf.mxu0
        %v2113 = vadd.f32 %v2008, %v2112
        %2114 = vmatmul.f32.gmra.mxu0 %v1674
        %v2115 = vpop.f32.mrf.mxu0
        %v2116 = vadd.f32 %v2011, %v2115
        %2117 = vmatmul.f32.gmra.mxu0 %v1676
        %v2118 = vpop.f32.mrf.mxu0
        %v2119 = vadd.f32 %v2014, %v2118
        %2120 = vmatmul.f32.gmra.mxu0 %v1678
        %v2121 = vpop.f32.mrf.mxu0
        %v2122 = vadd.f32 %v2017, %v2121
        %2123 = vmatmul.f32.gmra.mxu0 %v1680
        %v2124 = vpop.f32.mrf.mxu0
        %v2125 = vadd.f32 %v2020, %v2124
        %2126 = vmatmul.f32.gmra.mxu0 %v1682
        %v2127 = vpop.f32.mrf.mxu0
        %v2128 = vadd.f32 %v2023, %v2127
        %2129 = vdwg.mxu0
        %2130 = vmatpush.msra.mxu0 %v1747
        %2131 = vmatpush.msra.mxu0 %v1745
        %2132 = vmatpush.msra.mxu0 %v1743
        %2133 = vmatpush.msra.mxu0 %v1741
        %2134 = vmatpush.msra.mxu0 %v1739
        %2135 = vmatpush.msra.mxu0 %v1737
        %2136 = vmatpush.msra.mxu0 %v1735
        %2137 = vmatpush.msra.mxu0 %v1733
        %2138 = vmatpush.msra.mxu0 %v1731
        %2139 = vmatpush.msra.mxu0 %v1729
        %2140 = vmatpush.msra.mxu0 %v1727
        %2141 = vmatpush.msra.mxu0 %v1725
        %2142 = vmatpush.msra.mxu0 %v1723
        %2143 = vmatpush.msra.mxu0 %v1721
        %2144 = vmatpush.msra.mxu0 %v1719
        %2145 = vmatpush.msra.mxu0 %v1717
        %2146 = vmatmul.f32.gmra.mxu0 %v1673
        %v2147 = vpop.f32.mrf.mxu0
        %v2148 = vadd.f32 %v2113, %v2147
        %2149 = vmatmul.f32.gmra.mxu0 %v1675
        %v2150 = vpop.f32.mrf.mxu0
        %v2151 = vadd.f32 %v2116, %v2150
        %2152 = vmatmul.f32.gmra.mxu0 %v1677
        %v2153 = vpop.f32.mrf.mxu0
        %v2154 = vadd.f32 %v2119, %v2153
        %2155 = vmatmul.f32.gmra.mxu0 %v1679
        %v2156 = vpop.f32.mrf.mxu0
        %v2157 = vadd.f32 %v2122, %v2156
        %2158 = vmatmul.f32.gmra.mxu0 %v1681
        %v2159 = vpop.f32.mrf.mxu0
        %v2160 = vadd.f32 %v2125, %v2159
        %2161 = vmatmul.f32.gmra.mxu0 %v1683
        %v2162 = vpop.f32.mrf.mxu0
        %v2163 = vadd.f32 %v2128, %v2162
        %2164 = vdwg.mxu0
        %v2165 = vld [vmem:[#allocation2] sm:$0xfc]
        %v2166 = vld [vmem:[#allocation2 + $0x8] sm:$0xfc]
        %v2167 = vld [vmem:[#allocation2 + $0x20] sm:$0x3]
        %v2168 = vld [vmem:[#allocation2 + $0x28] sm:$0x3]
        %v2169 = vld [vmem:[#allocation2 + $0x30] sm:$0xfc]
        %v2170 = vld [vmem:[#allocation2 + $0x38] sm:$0xfc]
        %v2171 = vld [vmem:[#allocation2 + $0x50] sm:$0x3]
        %v2172 = vld [vmem:[#allocation2 + $0x58] sm:$0x3]
        %v2173 = vld [vmem:[#allocation2 + $0x60] sm:$0xfc]
        %v2174 = vld [vmem:[#allocation2 + $0x68] sm:$0xfc]
        %v2175 = vld [vmem:[#allocation2 + $0x80] sm:$0x3]
        %v2176 = vld [vmem:[#allocation2 + $0x88] sm:$0x3]
        %v2189 = vrot.slane %v2165, 2
        %v2190 = vrot.slane %v1674, 2
        %v2191 = vsel %vm814, %v2189, %v2190
        %v2192 = vrot.slane %v2166, 2
        %v2193 = vrot.slane %v1675, 2
        %v2194 = vsel %vm814, %v2192, %v2193
        %v2195 = vrot.slane %v2167, 2
        %v2196 = vsel %vm814, %v2190, %v2195
        %v2197 = vrot.slane %v2168, 2
        %v2198 = vsel %vm814, %v2193, %v2197
        %v2199 = vrot.slane %v2169, 2
        %v2200 = vrot.slane %v1678, 2
        %v2201 = vsel %vm814, %v2199, %v2200
        %v2202 = vrot.slane %v2170, 2
        %v2203 = vrot.slane %v1679, 2
        %v2204 = vsel %vm814, %v2202, %v2203
        %v2205 = vrot.slane %v2171, 2
        %v2206 = vsel %vm814, %v2200, %v2205
        %v2207 = vrot.slane %v2172, 2
        %v2208 = vsel %vm814, %v2203, %v2207
        %v2209 = vrot.slane %v2173, 2
        %v2210 = vrot.slane %v1682, 2
        %v2211 = vsel %vm814, %v2209, %v2210
        %v2212 = vrot.slane %v2174, 2
        %v2213 = vrot.slane %v1683, 2
        %v2214 = vsel %vm814, %v2212, %v2213
        %v2215 = vrot.slane %v2175, 2
        %v2216 = vsel %vm814, %v2210, %v2215
        %v2217 = vrot.slane %v2176, 2
        %v2218 = vsel %vm814, %v2213, %v2217
        %s2231 = scalar_lea.vmem [#allocation9], 1024
        %v2232 = vld [vmem:[%s2231] sm:$0xff]
        %v2233 = vld [vmem:[%s2231 + $0x8] sm:$0xff]
        %v2234 = vld [vmem:[%s2231 + $0x10] sm:$0xff]
        %v2235 = vld [vmem:[%s2231 + $0x18] sm:$0xff]
        %v2236 = vld [vmem:[%s2231 + $0x20] sm:$0xff]
        %v2237 = vld [vmem:[%s2231 + $0x28] sm:$0xff]
        %v2238 = vld [vmem:[%s2231 + $0x30] sm:$0xff]
        %v2239 = vld [vmem:[%s2231 + $0x38] sm:$0xff]
        %v2240 = vld [vmem:[%s2231 + $0x40] sm:$0xff]
        %v2241 = vld [vmem:[%s2231 + $0x48] sm:$0xff]
        %v2242 = vld [vmem:[%s2231 + $0x50] sm:$0xff]
        %v2243 = vld [vmem:[%s2231 + $0x58] sm:$0xff]
        %v2244 = vld [vmem:[%s2231 + $0x60] sm:$0xff]
        %v2245 = vld [vmem:[%s2231 + $0x68] sm:$0xff]
        %v2246 = vld [vmem:[%s2231 + $0x70] sm:$0xff]
        %v2247 = vld [vmem:[%s2231 + $0x78] sm:$0xff]
        %v2248 = vld [vmem:[%s2231 + $0x80] sm:$0xff]
        %v2249 = vld [vmem:[%s2231 + $0x88] sm:$0xff]
        %v2250 = vld [vmem:[%s2231 + $0x90] sm:$0xff]
        %v2251 = vld [vmem:[%s2231 + $0x98] sm:$0xff]
        %v2252 = vld [vmem:[%s2231 + $0xa0] sm:$0xff]
        %v2253 = vld [vmem:[%s2231 + $0xa8] sm:$0xff]
        %v2254 = vld [vmem:[%s2231 + $0xb0] sm:$0xff]
        %v2255 = vld [vmem:[%s2231 + $0xb8] sm:$0xff]
        %v2256 = vld [vmem:[%s2231 + $0xc0] sm:$0xff]
        %v2257 = vld [vmem:[%s2231 + $0xc8] sm:$0xff]
        %v2258 = vld [vmem:[%s2231 + $0xd0] sm:$0xff]
        %v2259 = vld [vmem:[%s2231 + $0xd8] sm:$0xff]
        %v2260 = vld [vmem:[%s2231 + $0xe0] sm:$0xff]
        %v2261 = vld [vmem:[%s2231 + $0xe8] sm:$0xff]
        %v2262 = vld [vmem:[%s2231 + $0xf0] sm:$0xff]
        %v2263 = vld [vmem:[%s2231 + $0xf8] sm:$0xff]
        %v2264 = vld [vmem:[%s2231 + $0x100] sm:$0xff]
        %v2265 = vld [vmem:[%s2231 + $0x108] sm:$0xff]
        %v2266 = vld [vmem:[%s2231 + $0x110] sm:$0xff]
        %v2267 = vld [vmem:[%s2231 + $0x118] sm:$0xff]
        %v2268 = vld [vmem:[%s2231 + $0x120] sm:$0xff]
        %v2269 = vld [vmem:[%s2231 + $0x128] sm:$0xff]
        %v2270 = vld [vmem:[%s2231 + $0x130] sm:$0xff]
        %v2271 = vld [vmem:[%s2231 + $0x138] sm:$0xff]
        %v2272 = vld [vmem:[%s2231 + $0x140] sm:$0xff]
        %v2273 = vld [vmem:[%s2231 + $0x148] sm:$0xff]
        %v2274 = vld [vmem:[%s2231 + $0x150] sm:$0xff]
        %v2275 = vld [vmem:[%s2231 + $0x158] sm:$0xff]
        %v2276 = vld [vmem:[%s2231 + $0x160] sm:$0xff]
        %v2277 = vld [vmem:[%s2231 + $0x168] sm:$0xff]
        %v2278 = vld [vmem:[%s2231 + $0x170] sm:$0xff]
        %v2279 = vld [vmem:[%s2231 + $0x178] sm:$0xff]
        %v2280 = vld [vmem:[%s2231 + $0x180] sm:$0xff]
        %v2281 = vld [vmem:[%s2231 + $0x188] sm:$0xff]
        %v2282 = vld [vmem:[%s2231 + $0x190] sm:$0xff]
        %v2283 = vld [vmem:[%s2231 + $0x198] sm:$0xff]
        %v2284 = vld [vmem:[%s2231 + $0x1a0] sm:$0xff]
        %v2285 = vld [vmem:[%s2231 + $0x1a8] sm:$0xff]
        %v2286 = vld [vmem:[%s2231 + $0x1b0] sm:$0xff]
        %v2287 = vld [vmem:[%s2231 + $0x1b8] sm:$0xff]
        %v2288 = vld [vmem:[%s2231 + $0x1c0] sm:$0xff]
        %v2289 = vld [vmem:[%s2231 + $0x1c8] sm:$0xff]
        %v2290 = vld [vmem:[%s2231 + $0x1d0] sm:$0xff]
        %v2291 = vld [vmem:[%s2231 + $0x1d8] sm:$0xff]
        %v2292 = vld [vmem:[%s2231 + $0x1e0] sm:$0xff]
        %v2293 = vld [vmem:[%s2231 + $0x1e8] sm:$0xff]
        %v2294 = vld [vmem:[%s2231 + $0x1f0] sm:$0xff]
        %v2295 = vld [vmem:[%s2231 + $0x1f8] sm:$0xff]
        %2296 = vmatpush.msra.mxu0 %v2262
        %2297 = vmatpush.msra.mxu0 %v2260
        %2298 = vmatpush.msra.mxu0 %v2258
        %2299 = vmatpush.msra.mxu0 %v2256
        %2300 = vmatpush.msra.mxu0 %v2254
        %2301 = vmatpush.msra.mxu0 %v2252
        %2302 = vmatpush.msra.mxu0 %v2250
        %2303 = vmatpush.msra.mxu0 %v2248
        %2304 = vmatpush.msra.mxu0 %v2246
        %2305 = vmatpush.msra.mxu0 %v2244
        %2306 = vmatpush.msra.mxu0 %v2242
        %2307 = vmatpush.msra.mxu0 %v2240
        %2308 = vmatpush.msra.mxu0 %v2238
        %2309 = vmatpush.msra.mxu0 %v2236
        %2310 = vmatpush.msra.mxu0 %v2234
        %2311 = vmatpush.msra.mxu0 %v2232
        %2312 = vmatmul.f32.gmra.mxu0 %v2191
        %v2313 = vpop.f32.mrf.mxu0
        %v2314 = vadd.f32 0.0, %v2313
        %2315 = vmatmul.f32.gmra.mxu0 %v2196
        %v2316 = vpop.f32.mrf.mxu0
        %v2317 = vadd.f32 0.0, %v2316
        %2318 = vmatmul.f32.gmra.mxu0 %v2201
        %v2319 = vpop.f32.mrf.mxu0
        %v2320 = vadd.f32 0.0, %v2319
        %2321 = vmatmul.f32.gmra.mxu0 %v2206
        %v2322 = vpop.f32.mrf.mxu0
        %v2323 = vadd.f32 0.0, %v2322
        %2324 = vmatmul.f32.gmra.mxu0 %v2211
        %v2325 = vpop.f32.mrf.mxu0
        %v2326 = vadd.f32 0.0, %v2325
        %2327 = vmatmul.f32.gmra.mxu0 %v2216
        %v2328 = vpop.f32.mrf.mxu0
        %v2329 = vadd.f32 0.0, %v2328
        %2330 = vdwg.mxu0
        %2331 = vmatpush.msra.mxu0 %v2294
        %2332 = vmatpush.msra.mxu0 %v2292
        %2333 = vmatpush.msra.mxu0 %v2290
        %2334 = vmatpush.msra.mxu0 %v2288
        %2335 = vmatpush.msra.mxu0 %v2286
        %2336 = vmatpush.msra.mxu0 %v2284
        %2337 = vmatpush.msra.mxu0 %v2282
        %2338 = vmatpush.msra.mxu0 %v2280
        %2339 = vmatpush.msra.mxu0 %v2278
        %2340 = vmatpush.msra.mxu0 %v2276
        %2341 = vmatpush.msra.mxu0 %v2274
        %2342 = vmatpush.msra.mxu0 %v2272
        %2343 = vmatpush.msra.mxu0 %v2270
        %2344 = vmatpush.msra.mxu0 %v2268
        %2345 = vmatpush.msra.mxu0 %v2266
        %2346 = vmatpush.msra.mxu0 %v2264
        %2347 = vmatmul.f32.gmra.mxu0 %v2194
        %v2348 = vpop.f32.mrf.mxu0
        %v2349 = vadd.f32 %v2314, %v2348
        %2350 = vmatmul.f32.gmra.mxu0 %v2198
        %v2351 = vpop.f32.mrf.mxu0
        %v2352 = vadd.f32 %v2317, %v2351
        %2353 = vmatmul.f32.gmra.mxu0 %v2204
        %v2354 = vpop.f32.mrf.mxu0
        %v2355 = vadd.f32 %v2320, %v2354
        %2356 = vmatmul.f32.gmra.mxu0 %v2208
        %v2357 = vpop.f32.mrf.mxu0
        %v2358 = vadd.f32 %v2323, %v2357
        %2359 = vmatmul.f32.gmra.mxu0 %v2214
        %v2360 = vpop.f32.mrf.mxu0
        %v2361 = vadd.f32 %v2326, %v2360
        %2362 = vmatmul.f32.gmra.mxu0 %v2218
        %v2363 = vpop.f32.mrf.mxu0
        %v2364 = vadd.f32 %v2329, %v2363
        %2365 = vdwg.mxu0
        %2366 = vmatpush.msra.mxu0 %v2263
        %2367 = vmatpush.msra.mxu0 %v2261
        %2368 = vmatpush.msra.mxu0 %v2259
        %2369 = vmatpush.msra.mxu0 %v2257
        %2370 = vmatpush.msra.mxu0 %v2255
        %2371 = vmatpush.msra.mxu0 %v2253
        %2372 = vmatpush.msra.mxu0 %v2251
        %2373 = vmatpush.msra.mxu0 %v2249
        %2374 = vmatpush.msra.mxu0 %v2247
        %2375 = vmatpush.msra.mxu0 %v2245
        %2376 = vmatpush.msra.mxu0 %v2243
        %2377 = vmatpush.msra.mxu0 %v2241
        %2378 = vmatpush.msra.mxu0 %v2239
        %2379 = vmatpush.msra.mxu0 %v2237
        %2380 = vmatpush.msra.mxu0 %v2235
        %2381 = vmatpush.msra.mxu0 %v2233
        %2382 = vmatmul.f32.gmra.mxu0 %v2191
        %v2383 = vpop.f32.mrf.mxu0
        %v2384 = vadd.f32 0.0, %v2383
        %2385 = vmatmul.f32.gmra.mxu0 %v2196
        %v2386 = vpop.f32.mrf.mxu0
        %v2387 = vadd.f32 0.0, %v2386
        %2388 = vmatmul.f32.gmra.mxu0 %v2201
        %v2389 = vpop.f32.mrf.mxu0
        %v2390 = vadd.f32 0.0, %v2389
        %2391 = vmatmul.f32.gmra.mxu0 %v2206
        %v2392 = vpop.f32.mrf.mxu0
        %v2393 = vadd.f32 0.0, %v2392
        %2394 = vmatmul.f32.gmra.mxu0 %v2211
        %v2395 = vpop.f32.mrf.mxu0
        %v2396 = vadd.f32 0.0, %v2395
        %2397 = vmatmul.f32.gmra.mxu0 %v2216
        %v2398 = vpop.f32.mrf.mxu0
        %v2399 = vadd.f32 0.0, %v2398
        %2400 = vdwg.mxu0
        %2401 = vmatpush.msra.mxu0 %v2295
        %2402 = vmatpush.msra.mxu0 %v2293
        %2403 = vmatpush.msra.mxu0 %v2291
        %2404 = vmatpush.msra.mxu0 %v2289
        %2405 = vmatpush.msra.mxu0 %v2287
        %2406 = vmatpush.msra.mxu0 %v2285
        %2407 = vmatpush.msra.mxu0 %v2283
        %2408 = vmatpush.msra.mxu0 %v2281
        %2409 = vmatpush.msra.mxu0 %v2279
        %2410 = vmatpush.msra.mxu0 %v2277
        %2411 = vmatpush.msra.mxu0 %v2275
        %2412 = vmatpush.msra.mxu0 %v2273
        %2413 = vmatpush.msra.mxu0 %v2271
        %2414 = vmatpush.msra.mxu0 %v2269
        %2415 = vmatpush.msra.mxu0 %v2267
        %2416 = vmatpush.msra.mxu0 %v2265
        %2417 = vmatmul.f32.gmra.mxu0 %v2194
        %v2418 = vpop.f32.mrf.mxu0
        %v2419 = vadd.f32 %v2384, %v2418
        %2420 = vmatmul.f32.gmra.mxu0 %v2198
        %v2421 = vpop.f32.mrf.mxu0
        %v2422 = vadd.f32 %v2387, %v2421
        %2423 = vmatmul.f32.gmra.mxu0 %v2204
        %v2424 = vpop.f32.mrf.mxu0
        %v2425 = vadd.f32 %v2390, %v2424
        %2426 = vmatmul.f32.gmra.mxu0 %v2208
        %v2427 = vpop.f32.mrf.mxu0
        %v2428 = vadd.f32 %v2393, %v2427
        %2429 = vmatmul.f32.gmra.mxu0 %v2214
        %v2430 = vpop.f32.mrf.mxu0
        %v2431 = vadd.f32 %v2396, %v2430
        %2432 = vmatmul.f32.gmra.mxu0 %v2218
        %v2433 = vpop.f32.mrf.mxu0
        %v2434 = vadd.f32 %v2399, %v2433
        %2435 = vdwg.mxu0
        %v2436 = vadd.f32 %v2078, %v2349
        %v2437 = vadd.f32 %v2148, %v2419
        %v2438 = vadd.f32 %v2081, %v2352
        %v2439 = vadd.f32 %v2151, %v2422
        %v2440 = vadd.f32 %v2084, %v2355
        %v2441 = vadd.f32 %v2154, %v2425
        %v2442 = vadd.f32 %v2087, %v2358
        %v2443 = vadd.f32 %v2157, %v2428
        %v2444 = vadd.f32 %v2090, %v2361
        %v2445 = vadd.f32 %v2160, %v2431
        %v2446 = vadd.f32 %v2093, %v2364
        %v2447 = vadd.f32 %v2163, %v2434
        %v2448 = vld [vmem:[%s4] sm:$0x3]
        %v2450 = vperm.slane %v2448, 0
        %v2451 = vperm.slane %v2448, 1
        %v2454 = vadd.f32 %v2436, %v2450
        %v2455 = vadd.f32 %v2437, %v2451
        %v2456 = vadd.f32 %v2438, %v2450
        %v2457 = vadd.f32 %v2439, %v2451
        %v2458 = vadd.f32 %v2440, %v2450
        %v2459 = vadd.f32 %v2441, %v2451
        %v2460 = vadd.f32 %v2442, %v2450
        %v2461 = vadd.f32 %v2443, %v2451
        %v2462 = vadd.f32 %v2444, %v2450
        %v2463 = vadd.f32 %v2445, %v2451
        %v2464 = vadd.f32 %v2446, %v2450
        %v2465 = vadd.f32 %v2447, %v2451
        %v2466 = vadd.f32 %v2454, %v335
        %v2467 = vadd.f32 %v2455, %v338
        %v2468 = vadd.f32 %v2456, %v340
        %v2469 = vadd.f32 %v2457, %v342
        %v2470 = vadd.f32 %v2458, %v345
        %v2471 = vadd.f32 %v2459, %v348
        %v2472 = vadd.f32 %v2460, %v350
        %v2473 = vadd.f32 %v2461, %v352
        %v2474 = vadd.f32 %v2462, %v355
        %v2475 = vadd.f32 %v2463, %v358
        %v2476 = vadd.f32 %v2464, %v360
        %v2477 = vadd.f32 %v2465, %v362
        %2478 = vst [vmem:[%s293] sm:$0xff] %v2466
        %2479 = vst [vmem:[%s293 + $0x8] sm:$0xff] %v2467
        %2480 = vst [vmem:[%s293 + $0x10] sm:$0xff] %v2468
        %2481 = vst [vmem:[%s293 + $0x18] sm:$0xff] %v2469
        %2482 = vst [vmem:[%s293 + $0x20] sm:$0xff] %v2470
        %2483 = vst [vmem:[%s293 + $0x28] sm:$0xff] %v2471
        %2484 = vst [vmem:[%s293 + $0x30] sm:$0xff] %v2472
        %2485 = vst [vmem:[%s293 + $0x38] sm:$0xff] %v2473
        %2486 = vst [vmem:[%s293 + $0x40] sm:$0xff] %v2474
        %2487 = vst [vmem:[%s293 + $0x48] sm:$0xff] %v2475
        %2488 = vst [vmem:[%s293 + $0x50] sm:$0xff] %v2476
        %2489 = vst [vmem:[%s293 + $0x58] sm:$0xff] %v2477
        %s2490 = sand.u32 %s142, 1
        %s2491 = scalar_lea.sflag [#allocation5], %s2490
        %s2492 = sand.u32 %s142, 1
        %s2493 = smul.addr %s2492, 96
        %s2494 = scalar_lea.vmem [#allocation11], %s2493
        // Predicated region
        $region57: #{tpu_custom_call.1} parent=39 // pred_check
          %p2495 = pneg %p152
        $region58: #{tpu_custom_call.1} parent=39 // pred_check_branch
          %2497 = sbr.rel (%p2495) target = $region60
        $region59: #{tpu_custom_call.1} parent=39 // pred_region
          %s2498 = smul.u32 3, %s24
          %2500 = vsyncadd %s2491, 0
          %s2501 = smul.addr %s2498, 4
          %s2502 = smul.addr %s2501, 8
          %s2503 = scalar_lea.hbm %s5, %s2502
          %s2504 = sshll.u32 %s2494, 4
          %s2505 = int_to_ptr.vmem [resolvable:$true] %s2504
          %s2506 = sshll.u32 %s2503, 4
          %s2507 = int_to_ptr.hbm [resolvable:$true] %s2506
          %2512 = dma.vmem_to_hbm [thread:$0]  %s2505, 1536, %s2507, %s2491, 256, 256, 16
        $region60: #{tpu_custom_call.1} parent=39 // pred_fallthru
          _
      $region40: #{tpu_custom_call.1} parent=5 // pred_fallthru
        _
      %p2513 = scmp.le.s32.totalorder 2, %s19
      // Predicated region
      $region61: #{tpu_custom_call.1} parent=5 // pred_check
        %p2514 = pneg %p2513
      $region62: #{tpu_custom_call.1} parent=5 // pred_check_branch
        %2516 = sbr.rel (%p2514) target = $region64
      $region63: #{tpu_custom_call.1} parent=5 // pred_region
        %s2517 = ssub.s32 %s19, 2
        // Predicated region
        $region65: #{tpu_custom_call.1} parent=63 // pred_check
          %p2518 = pneg %p158
        $region66: #{tpu_custom_call.1} parent=63 // pred_check_branch
          %2520 = sbr.rel (%p2518) target = $region68
        $region67: #{tpu_custom_call.1} parent=63 // pred_region
          %s2521 = sand.u32 %s143, 1
          %s2522 = scalar_lea.sflag [#allocation5], %s2521
          %s2523 = sand.u32 %s143, 1
          %s2524 = smul.addr %s2523, 96
          %s2525 = scalar_lea.vmem [#allocation11], %s2524
          %2527 = dma.done %s2522, 1536
        $region68: #{tpu_custom_call.1} parent=63 // pred_fallthru
          _
      $region64: #{tpu_custom_call.1} parent=5 // pred_fallthru
        _
    $region6: #{tpu_custom_call.1} parent=1 // loop_footer
      %s23 = sadd.s32 1, %s19
    $region7: #{tpu_custom_call.1} parent=1 // loop_footer_branch
      %18 = sbr.rel target = $region3
    $region8: #{tpu_custom_call.1} parent=1 // loop_exit
      _
    %2528 = vsyncpa [#allocation4], 1
    %s2529 = scalar_lea.sflag [#allocation4], 1
    %2530 = vsyncpa %s2529, 1
    %2531 = vsyncpa [#allocation7], 1
    %2532 = vsyncpa [#allocation10], 1
    %2533 = vsyncpa [#allocation5], 1
    %s2534 = scalar_lea.sflag [#allocation5], 1
    %2535 = vsyncpa %s2534, 1

</llo_original>
